<compile_context>
chip_gen: v7x
topology: tpu7x:2x2x1
jax: 0.10.0
libtpu: 0.0.40
codegen_flags: <defaults>
</compile_context>

<pallas_src>
import math

import jax
import jax.numpy as jnp
from jax.experimental import pallas as pl
from jax.experimental.pallas import tpu as pltpu


def _round_up(a, b):
    return (a + b - 1) // b * b


def _lane_pad(c):
    return _round_up(c, 128)


def _resident_spec(arr):
    """Full-array block with a constant index_map -> stays VMEM-resident across grid steps."""
    zeros = (0,) * arr.ndim
    return pl.BlockSpec(arr.shape, lambda i, _z=zeros: _z)


def _padded_vmem_bytes(arr):
    """VMEM footprint of a small 2-D resident weight incl. (8, 128) tile padding."""
    r, c = arr.shape
    return _round_up(max(r, 1), 8) * _lane_pad(c) * arr.dtype.itemsize


def _vmem_capacity_bytes():
    try:
        return int(pltpu.get_tpu_info().vmem_capacity_bytes)
    except Exception:  # unknown backend / older jax -> assume smallest (v7x per-core) VMEM
        return 64 << 20


# --------------------------------------------------------------------------------------
# Pallas kernel: one batch tile per grid step.  Everything inside is 2-D and lane-dense.
# --------------------------------------------------------------------------------------
def attention_layer_kernel(
    x_ref,        # [tB, Cx]      node features, f32 (zero-padded to Cout width if Cin < Cout)
    nbr_ref,      # [tB, NC]      neighbors flattened to N*Cin lanes (bf16 or f32 stream)
    wqkg_ref,     # (Cx, NC+1)    cols [0:NC] = tile(Wq@Wk^T/sqrt(D), N); col NC = gate Wgx
    bqkg_ref,     # (1, NC+1)     cols [0:NC] = tile(bq@Wk^T/sqrt(D), N); col NC = gate bias
    sseg_ref,     # (NC, N)       0/1 segment-sum matrix: sseg[n*Cin+c, n] = 1
    wexp_ref,     # (N, NC)       = sseg^T, expands attn back to lane-replicated form
    wvo_rep_ref,  # (NC, Cout)    tile(Wv@Wo, (N, 1))
    wse1_ref,     # (Cout, Cse)   SE fc1 (no bias)
    wse2_ref,     # (Cse, Cout)   SE fc2 (no bias)
    bvg_ref,      # (2, Cout)     row 0 = bv@Wo + bo ; row 1 = gate Wgo (as a row)
    out_ref,      # [tB, Cout]
):
    f32 = jnp.float32
    nc = nbr_ref.shape[-1]

    x = x_ref[...]                                  # [tB, Cx] f32
    nbr = nbr_ref[...].astype(f32)                  # [tB, NC] (bf16 stream upcast after load)

    # One MXU pass produces the lane-replicated query/key metric AND the x-side gate logit:
    #   qkg[:, n*Cin+c] = <x, (Wq Wk^T)[:, c]>/sqrt(D) + (bq Wk^T)[c]   (independent of n)
    #   qkg[:, NC]      = x @ Wgx + b_gate
    qkg = jnp.dot(x, wqkg_ref[...], preferred_element_type=f32) + bqkg_ref[...]   # [tB, NC+1]
    qk_rep = qkg[:, :nc]                            # [tB, NC]
    gate_x = qkg[:, nc:nc + 1]                      # [tB, 1]

    # Scores via a segmented lane reduction on the MXU (the q·bk term is constant over
    # neighbors and therefore softmax-invariant -> dropped in the wrapper-side fusion).
    s = jnp.dot(nbr * qk_rep, sseg_ref[...], preferred_element_type=f32)          # [tB, N]
    s = s - jnp.max(s, axis=-1, keepdims=True)                                    # stable
    p = jnp.exp(s)
    attn = p * pl.reciprocal(jnp.sum(p, axis=-1, keepdims=True), approx=True)     # [tB, N]

    # Expand attn to lane-replicated form, weight the neighbors, and apply the fused
    # value+output projection in one [tB, NC] @ [NC, Cout] MXU matmul.
    attn_rep = jnp.dot(attn, wexp_ref[...], preferred_element_type=f32)           # [tB, NC]
    proj = (jnp.dot(attn_rep * nbr, wvo_rep_ref[...], preferred_element_type=f32)
            + bvg_ref[0:1, :])                                                    # [tB, Cout]

    # SE block (avg-pool over a length-1 trailing dim is the identity).
    h = jnp.maximum(jnp.dot(proj, wse1_ref[...], preferred_element_type=f32), 0.0)
    se = jax.nn.sigmoid(jnp.dot(h, wse2_ref[...], preferred_element_type=f32))
    se_out = proj * se                                                            # [tB, Cout]

    # Gated residual: x already carries the residual zero padding, so it doubles as x_matched.
    gate_logit = gate_x + jnp.sum(se_out * bvg_ref[1:2, :], axis=-1, keepdims=True)
    g = jax.nn.sigmoid(gate_logit)
    out_ref[...] = (g * se_out + (1.0 - g) * x).astype(out_ref.dtype)


# --------------------------------------------------------------------------------------
# Wrapper: weight fusion / packing, lane-dense neighbor layout, batch tiling, pallas_call.
# --------------------------------------------------------------------------------------
def attention_layer_forward(x, neighbors, params, *, neighbors_dtype=jnp.bfloat16):
    B, Cin = x.shape
    _, N, Cn = neighbors.shape
    assert Cn == Cin
    D = params["wq"].shape[1]
    Cout = params["wo"].shape[1]
    Cse = params["wse1"].shape[1]
    f32 = jnp.float32
    x = x.astype(f32)

    # ---- exact wrapper-side weight fusion (see header) ----
    scale = 1.0 / math.sqrt(D)
    wqk = (params["wq"] @ params["wk"].T) * scale            # (Cin, Cin)
    bqk = (params["bq"] @ params["wk"].T) * scale            # (1, Cin)
    wvo = params["wv"] @ params["wo"]                        # (Cin, Cout)
    bvo = params["bv"] @ params["wo"] + params["bo"]         # (1, Cout)
    wgx = params["wgx"]                                      # (Cin, 1)
    wgo_row = params["wgo"].T                                # (1, Cout)
    bg = params["bg"]                                        # (1, 1)

    # ---- residual width matching: pad the (small) x / x-side weight rows once; the padded x
    #      doubles as x_matched (zero rows contribute nothing to any x-side matmul) ----
    if Cin == Cout:
        Cx = Cin
    else:
        assert Cout > Cin, "TODO(synk): Cin > Cout (negative F.pad crop) not implemented"
        Cx = Cout
        pad = Cout - Cin
        x = jnp.pad(x, ((0, 0), (0, pad)))
        wqk = jnp.pad(wqk, ((0, pad), (0, 0)))
        wgx = jnp.pad(wgx, ((0, pad), (0, 0)))

    NC = N * Cin

    # ---- lane-dense weight packing (gate x-column + gate bias fold into the qk matmul) ----
    wqkg = jnp.concatenate([jnp.tile(wqk, (1, N)), wgx], axis=1).astype(f32)   # (Cx, NC+1)
    bqkg = jnp.concatenate([jnp.tile(bqk, (1, N)), bg], axis=1).astype(f32)    # (1, NC+1)
    sseg = jnp.repeat(jnp.eye(N, dtype=f32), Cin, axis=0)                      # (NC, N)
    wexp = sseg.T                                                              # (N, NC)
    wvo_rep = jnp.tile(wvo, (N, 1)).astype(f32)                                # (NC, Cout)
    bvg = jnp.concatenate([bvo, wgo_row], axis=0).astype(f32)                  # (2, Cout)
    weights = (wqkg, bqkg, sseg, wexp, wvo_rep,
               params["wse1"].astype(f32), params["wse2"].astype(f32), bvg)

    # ---- dominant stream: free contiguous reshape to [B, N*Cin]; bf16 over the wire.
    #      (In a full model the producer should emit bf16 directly so this cast fuses away.)
    nbr2 = neighbors.reshape(B, NC)
    if nbr2.dtype != neighbors_dtype:
        nbr2 = nbr2.astype(neighbors_dtype)
    nbr_bytes = jnp.dtype(neighbors_dtype).itemsize

    # ---- generation-aware batch tile: ~70% of per-core VMEM, honest about 128-lane padding ----
    vmem_cap = _vmem_capacity_bytes()
    weight_vmem = 2 * sum(_padded_vmem_bytes(w) for w in weights)   # pipeline double-buffers them
    act_budget = max(int(0.70 * vmem_cap) - weight_vmem, 4 << 20)
    per_row_bytes = (
        2 * 4 * _lane_pad(Cx)                 # x tile, double-buffered, f32
        + 2 * nbr_bytes * _lane_pad(NC)       # neighbor tile, double-buffered, stream dtype
        + 2 * 4 * _lane_pad(Cout)             # output tile, double-buffered, f32
        + 3 * 4 * _lane_pad(NC)               # f32 upcast + score/aggregate temporaries
        + 4 * (_lane_pad(NC + 1) + 2 * _lane_pad(Cout) + _lane_pad(Cse) + 3 * 128)
    )
    tile_b = max(8, min(4096, act_budget // per_row_bytes) // 8 * 8)
    tile_b = min(tile_b, _round_up(B, 8))
    if B >= 16:
        # >= 2 grid steps so dimension_semantics=("parallel",) can shard the batch axis across
        # both TensorCores on v7x megacore parts (costs ~0.35us extra on 1-TC chips).
        tile_b = min(tile_b, max(8, _round_up(pl.cdiv(B, 2), 8)))
    grid = (pl.cdiv(B, tile_b),)   # ragged last block is masked by Pallas; no HBM pad copy

    vmem_limit = int(min(max(weight_vmem + tile_b * per_row_bytes + (4 << 20), 32 << 20),
                         vmem_cap))

    cost = pl.CostEstimate(
        flops=int(2 * B * (Cx * (NC + 1) + 2 * NC * N + NC * Cout + 2 * Cout * Cse)
                  + 4 * B * NC + 10 * B * Cout),
        transcendentals=int(B * (N + 1 + Cout + 1)),
        bytes_accessed=int(B * (4 * Cx + nbr_bytes * NC + 4 * Cout)
                           + 4 * sum(int(w.size) for w in weights)),
    )

    in_specs = [
        pl.BlockSpec((tile_b, Cx), lambda i: (i, 0)),     # x (residual-width padded)
        pl.BlockSpec((tile_b, NC), lambda i: (i, 0)),     # neighbors, flattened + lane-dense
    ] + [_resident_spec(w) for w in weights]
    out_specs = pl.BlockSpec((tile_b, Cout), lambda i: (i, 0))

    return pl.pallas_call(
        attention_layer_kernel,
        out_shape=jax.ShapeDtypeStruct((B, Cout), f32),
        grid_spec=pltpu.PrefetchScalarGridSpec(
            num_scalar_prefetch=0,
            grid=grid,
            in_specs=in_specs,
            out_specs=out_specs,
        ),
        compiler_params=pltpu.CompilerParams(
            dimension_semantics=("parallel",),
            vmem_limit_bytes=vmem_limit,
        ),
        cost_estimate=cost,
    )(x, nbr2, *weights)


# --------------------------------------------------------------------------------------
# Deterministic parameter init (xavier_uniform weights; biases given small non-zero values so
# the test exercises the kernel's bias-folding / softmax-invariance algebra — the torch module
# initializes them to zero).
# --------------------------------------------------------------------------------------
def xavier_uniform(key, fan_in, fan_out):
    bound = math.sqrt(6.0 / (fan_in + fan_out))
    return jax.random.uniform(key, (fan_in, fan_out), jnp.float32, -bound, bound)


def make_params(key, in_channels, out_channels, num_heads=1, se_reduction=4):
    head_dim = max(1, in_channels // num_heads)
    d = head_dim * num_heads
    keys = jax.random.split(key, 12)

    def bias(k, n):
        return 0.1 * jax.random.normal(k, (1, n), jnp.float32)

    params = {
        "wq": xavier_uniform(keys[0], in_channels, d), "bq": bias(keys[1], d),
        "wk": xavier_uniform(keys[2], in_channels, d), "bk": bias(keys[3], d),
        "wv": xavier_uniform(keys[4], in_channels, d), "bv": bias(keys[5], d),
        "wo": xavier_uniform(keys[6], d, out_channels), "bo": bias(keys[7], out_channels),
        "wse1": xavier_uniform(keys[8], out_channels, out_channels // se_reduction),
        "wse2": xavier_uniform(keys[9], out_channels // se_reduction, out_channels),
    }
    wg = xavier_uniform(keys[10], in_channels + out_channels, 1)
    params["wgx"] = wg[:in_channels, :]
    params["wgo"] = wg[in_channels:, :]
    params["bg"] = bias(keys[11], 1)
    return params


# --------------------------------------------------------------------------------------
# Pure-JAX reference mirroring the literal PyTorch forward (num_heads=1).
# --------------------------------------------------------------------------------------
def reference_forward(x, neighbors, params):
    d = params["wq"].shape[1]
    q = x @ params["wq"] + params["bq"]
    k = neighbors @ params["wk"] + params["bk"]
    v = neighbors @ params["wv"] + params["bv"]
    scores = jnp.einsum("bd,bnd->bn", q, k) / math.sqrt(d)
    attn = jax.nn.softmax(scores, axis=-1)
    ctx = jnp.einsum("bn,bnd->bd", attn, v)
    proj = ctx @ params["wo"] + params["bo"]
    se = jax.nn.sigmoid(jnp.maximum(proj @ params["wse1"], 0.0) @ params["wse2"])
    se_out = proj * se
    cout = proj.shape[1]
    xm = jnp.pad(x, ((0, 0), (0, cout - x.shape[1]))) if x.shape[1] != cout else x
    g = jax.nn.sigmoid(x @ params["wgx"] + se_out @ params["wgo"] + params["bg"])
    return g * se_out + (1.0 - g) * xm


if __name__ == "__main__":
    B, N, Cin, Cout = 16, 10, 32, 32
    key = jax.random.PRNGKey(0)
    kx, kn, kp = jax.random.split(key, 3)

    x = jax.random.normal(kx, (B, Cin), jnp.float32)
    # Neighbors are streamed to the kernel in bf16; pre-round so the f32 reference sees the
    # exact same values (the kernel upcasts to f32 right after the VMEM load).
    neighbors_bf16 = jax.random.normal(kn, (B, N, Cin), jnp.float32).astype(jnp.bfloat16)
    neighbors_f32 = neighbors_bf16.astype(jnp.float32)
    params = make_params(kp, Cin, Cout, num_heads=1, se_reduction=4)

    out = attention_layer_forward(x, neighbors_bf16, params)
    out = jax.block_until_ready(out)

    ref = reference_forward(x, neighbors_f32, params)
    assert out.shape == (B, Cout)
    assert bool(jnp.all(jnp.isfinite(out)))
    max_err = float(jnp.max(jnp.abs(out - ref)))
    # tolerance covers the approx EUP reciprocal in the softmax + fused-weight fp reassociation
    assert bool(jnp.allclose(out, ref, rtol=2e-3, atol=2e-3)), f"mismatch vs reference: {max_err}"

    print("KERNEL_OK")
</pallas_src>

<mosaic_0001>
module attributes {stable_mosaic.version = 11 : i64} {
  func.func @attention_layer_kernel(%arg0: i32, %arg1: memref<8x32xf32, #tpu.memory_space<vmem>>, %arg2: memref<8x320xbf16, #tpu.memory_space<vmem>>, %arg3: memref<32x321xf32, #tpu.memory_space<vmem>>, %arg4: memref<1x321xf32, #tpu.memory_space<vmem>>, %arg5: memref<320x10xf32, #tpu.memory_space<vmem>>, %arg6: memref<10x320xf32, #tpu.memory_space<vmem>>, %arg7: memref<320x32xf32, #tpu.memory_space<vmem>>, %arg8: memref<32x8xf32, #tpu.memory_space<vmem>>, %arg9: memref<8x32xf32, #tpu.memory_space<vmem>>, %arg10: memref<2x32xf32, #tpu.memory_space<vmem>>, %arg11: memref<8x32xf32, #tpu.memory_space<vmem>>) attributes {dimension_semantics = [#tpu.dimension_semantics<parallel>], iteration_bounds = array<i64: 2>, scalar_prefetch = 0 : i64, scratch_operands = 0 : i64, tpu.core_type = #tpu.core_type<tc>, window_params = [{transform_indices = @transform_0, window_bounds = array<i64: 8, 32>}, {transform_indices = @transform_1, window_bounds = array<i64: 8, 320>}, {pipeline_mode = #tpu.pipeline_mode<synchronous>, transform_indices = @transform_2, window_bounds = array<i64: 32, 321>}, {pipeline_mode = #tpu.pipeline_mode<synchronous>, transform_indices = @transform_3, window_bounds = array<i64: 1, 321>}, {pipeline_mode = #tpu.pipeline_mode<synchronous>, transform_indices = @transform_4, window_bounds = array<i64: 320, 10>}, {pipeline_mode = #tpu.pipeline_mode<synchronous>, transform_indices = @transform_5, window_bounds = array<i64: 10, 320>}, {pipeline_mode = #tpu.pipeline_mode<synchronous>, transform_indices = @transform_6, window_bounds = array<i64: 320, 32>}, {pipeline_mode = #tpu.pipeline_mode<synchronous>, transform_indices = @transform_7, window_bounds = array<i64: 32, 8>}, {pipeline_mode = #tpu.pipeline_mode<synchronous>, transform_indices = @transform_8, window_bounds = array<i64: 8, 32>}, {pipeline_mode = #tpu.pipeline_mode<synchronous>, transform_indices = @transform_9, window_bounds = array<i64: 2, 32>}, {transform_indices = @transform_10, window_bounds = array<i64: 8, 32>}]} {
    %c0 = arith.constant 0 : index
    %c0_0 = arith.constant 0 : index
    %0 = vector.load %arg1[%c0, %c0_0] : memref<8x32xf32, #tpu.memory_space<vmem>>, vector<8x32xf32>
    %c0_1 = arith.constant 0 : index
    %c0_2 = arith.constant 0 : index
    %1 = vector.load %arg2[%c0_1, %c0_2] : memref<8x320xbf16, #tpu.memory_space<vmem>>, vector<8x320xbf16>
    %2 = arith.extf %1 : vector<8x320xbf16> to vector<8x320xf32>
    %c0_3 = arith.constant 0 : index
    %c0_4 = arith.constant 0 : index
    %3 = vector.load %arg3[%c0_3, %c0_4] : memref<32x321xf32, #tpu.memory_space<vmem>>, vector<32x321xf32>
    %cst = arith.constant dense<0.000000e+00> : vector<8x321xf32>
    %4 = tpu.matmul %0, %3, %cst {dimension_numbers = #tpu.dot_dimension_numbers<[1], [0], [0], [1], [0, 0, 1, 1], [], []>} : vector<8x32xf32>, vector<32x321xf32>, vector<8x321xf32> -> vector<8x321xf32>
    %c0_5 = arith.constant 0 : index
    %c0_6 = arith.constant 0 : index
    %5 = vector.load %arg4[%c0_5, %c0_6] : memref<1x321xf32, #tpu.memory_space<vmem>>, vector<1x321xf32>
    %6 = vector.broadcast %5 : vector<1x321xf32> to vector<8x321xf32>
    %7 = arith.addf %4, %6 : vector<8x321xf32>
    %8 = vector.extract_strided_slice %7 {offsets = [0, 0], sizes = [8, 320], strides = [1, 1]} : vector<8x321xf32> to vector<8x320xf32>
    %9 = vector.extract_strided_slice %7 {offsets = [0, 320], sizes = [8, 1], strides = [1, 1]} : vector<8x321xf32> to vector<8x1xf32>
    %10 = arith.mulf %2, %8 : vector<8x320xf32>
    %c0_7 = arith.constant 0 : index
    %c0_8 = arith.constant 0 : index
    %11 = vector.load %arg5[%c0_7, %c0_8] : memref<320x10xf32, #tpu.memory_space<vmem>>, vector<320x10xf32>
    %cst_9 = arith.constant dense<0.000000e+00> : vector<8x10xf32>
    %12 = tpu.matmul %10, %11, %cst_9 {dimension_numbers = #tpu.dot_dimension_numbers<[1], [0], [0], [1], [0, 0, 1, 1], [], []>} : vector<8x320xf32>, vector<320x10xf32>, vector<8x10xf32> -> vector<8x10xf32>
    %cst_10 = arith.constant dense<0xFF800000> : vector<8xf32>
    %13 = vector.multi_reduction <maximumf>, %12, %cst_10 [1] : vector<8x10xf32> to vector<8xf32>
    %14 = vector.shape_cast %13 : vector<8xf32> to vector<8x1xf32>
    %15 = vector.broadcast %14 : vector<8x1xf32> to vector<8x10xf32>
    %16 = arith.subf %12, %15 : vector<8x10xf32>
    %17 = math.exp %16 : vector<8x10xf32>
    %cst_11 = arith.constant dense<0.000000e+00> : vector<8xf32>
    %18 = vector.multi_reduction <add>, %17, %cst_11 [1] : vector<8x10xf32> to vector<8xf32>
    %19 = vector.shape_cast %18 : vector<8xf32> to vector<8x1xf32>
    %20 = tpu.reciprocal %19 {approx = true} : vector<8x1xf32> -> vector<8x1xf32>
    %21 = vector.broadcast %20 : vector<8x1xf32> to vector<8x10xf32>
    %22 = arith.mulf %17, %21 : vector<8x10xf32>
    %c0_12 = arith.constant 0 : index
    %c0_13 = arith.constant 0 : index
    %23 = vector.load %arg6[%c0_12, %c0_13] : memref<10x320xf32, #tpu.memory_space<vmem>>, vector<10x320xf32>
    %cst_14 = arith.constant dense<0.000000e+00> : vector<8x320xf32>
    %24 = tpu.matmul %22, %23, %cst_14 {dimension_numbers = #tpu.dot_dimension_numbers<[1], [0], [0], [1], [0, 0, 1, 1], [], []>} : vector<8x10xf32>, vector<10x320xf32>, vector<8x320xf32> -> vector<8x320xf32>
    %25 = arith.mulf %24, %2 : vector<8x320xf32>
    %c0_15 = arith.constant 0 : index
    %c0_16 = arith.constant 0 : index
    %26 = vector.load %arg7[%c0_15, %c0_16] : memref<320x32xf32, #tpu.memory_space<vmem>>, vector<320x32xf32>
    %cst_17 = arith.constant dense<0.000000e+00> : vector<8x32xf32>
    %27 = tpu.matmul %25, %26, %cst_17 {dimension_numbers = #tpu.dot_dimension_numbers<[1], [0], [0], [1], [0, 0, 1, 1], [], []>} : vector<8x320xf32>, vector<320x32xf32>, vector<8x32xf32> -> vector<8x32xf32>
    %c0_18 = arith.constant 0 : index
    %c0_19 = arith.constant 0 : index
    %28 = vector.load %arg10[%c0_18, %c0_19] : memref<2x32xf32, #tpu.memory_space<vmem>>, vector<1x32xf32>
    %29 = vector.broadcast %28 : vector<1x32xf32> to vector<8x32xf32>
    %30 = arith.addf %27, %29 : vector<8x32xf32>
    %c0_20 = arith.constant 0 : index
    %c0_21 = arith.constant 0 : index
    %31 = vector.load %arg8[%c0_20, %c0_21] : memref<32x8xf32, #tpu.memory_space<vmem>>, vector<32x8xf32>
    %cst_22 = arith.constant dense<0.000000e+00> : vector<8x8xf32>
    %32 = tpu.matmul %30, %31, %cst_22 {dimension_numbers = #tpu.dot_dimension_numbers<[1], [0], [0], [1], [0, 0, 1, 1], [], []>} : vector<8x32xf32>, vector<32x8xf32>, vector<8x8xf32> -> vector<8x8xf32>
    %cst_23 = arith.constant 0.000000e+00 : f32
    %33 = vector.broadcast %cst_23 : f32 to vector<8x8xf32>
    %34 = arith.maximumf %32, %33 : vector<8x8xf32>
    %c0_24 = arith.constant 0 : index
    %c0_25 = arith.constant 0 : index
    %35 = vector.load %arg9[%c0_24, %c0_25] : memref<8x32xf32, #tpu.memory_space<vmem>>, vector<8x32xf32>
    %cst_26 = arith.constant dense<0.000000e+00> : vector<8x32xf32>
    %36 = tpu.matmul %34, %35, %cst_26 {dimension_numbers = #tpu.dot_dimension_numbers<[1], [0], [0], [1], [0, 0, 1, 1], [], []>} : vector<8x8xf32>, vector<8x32xf32>, vector<8x32xf32> -> vector<8x32xf32>
    %37 = arith.negf %36 : vector<8x32xf32>
    %38 = math.exp %37 : vector<8x32xf32>
    %cst_27 = arith.constant 1.000000e+00 : f32
    %39 = vector.broadcast %cst_27 : f32 to vector<8x32xf32>
    %40 = arith.addf %39, %38 : vector<8x32xf32>
    %41 = arith.divf %39, %40 : vector<8x32xf32>
    %42 = arith.mulf %30, %41 : vector<8x32xf32>
    %c1 = arith.constant 1 : index
    %c0_28 = arith.constant 0 : index
    %43 = vector.load %arg10[%c1, %c0_28] : memref<2x32xf32, #tpu.memory_space<vmem>>, vector<1x32xf32>
    %44 = vector.broadcast %43 : vector<1x32xf32> to vector<8x32xf32>
    %45 = arith.mulf %42, %44 : vector<8x32xf32>
    %cst_29 = arith.constant dense<0.000000e+00> : vector<8xf32>
    %46 = vector.multi_reduction <add>, %45, %cst_29 [1] : vector<8x32xf32> to vector<8xf32>
    %47 = vector.shape_cast %46 : vector<8xf32> to vector<8x1xf32>
    %48 = arith.addf %9, %47 : vector<8x1xf32>
    %49 = arith.negf %48 : vector<8x1xf32>
    %50 = math.exp %49 : vector<8x1xf32>
    %cst_30 = arith.constant 1.000000e+00 : f32
    %51 = vector.broadcast %cst_30 : f32 to vector<8x1xf32>
    %52 = arith.addf %51, %50 : vector<8x1xf32>
    %53 = arith.divf %51, %52 : vector<8x1xf32>
    %54 = vector.broadcast %53 : vector<8x1xf32> to vector<8x32xf32>
    %55 = arith.mulf %54, %42 : vector<8x32xf32>
    %cst_31 = arith.constant 1.000000e+00 : f32
    %56 = vector.broadcast %cst_31 : f32 to vector<8x1xf32>
    %57 = arith.subf %56, %53 : vector<8x1xf32>
    %58 = vector.broadcast %57 : vector<8x1xf32> to vector<8x32xf32>
    %59 = arith.mulf %58, %0 : vector<8x32xf32>
    %60 = arith.addf %55, %59 : vector<8x32xf32>
    %c0_32 = arith.constant 0 : index
    %c0_33 = arith.constant 0 : index
    %61 = vector.load %arg11[%c0_32, %c0_33] : memref<8x32xf32, #tpu.memory_space<vmem>>, vector<8x32xf32>
    tpu.vector_store %arg11[%c0_32, %c0_33], %60 {strides = array<i32>} : memref<8x32xf32, #tpu.memory_space<vmem>>, vector<8x32xf32>,
    return
  }
  func.func @transform_0(%arg0: i32) -> (i32, i32) {
    %c0_i32 = arith.constant 0 : i32
    %c0_i32_0 = arith.constant 0 : i32
    return %arg0, %c0_i32 : i32, i32
  }
  func.func @transform_1(%arg0: i32) -> (i32, i32) {
    %c0_i32 = arith.constant 0 : i32
    %c0_i32_0 = arith.constant 0 : i32
    return %arg0, %c0_i32 : i32, i32
  }
  func.func @transform_2(%arg0: i32) -> (i32, i32) {
    %c0_i32 = arith.constant 0 : i32
    %c0_i32_0 = arith.constant 0 : i32
    %c0_i32_1 = arith.constant 0 : i32
    return %c0_i32, %c0_i32_0 : i32, i32
  }
  func.func @transform_3(%arg0: i32) -> (i32, i32) {
    %c0_i32 = arith.constant 0 : i32
    %c0_i32_0 = arith.constant 0 : i32
    %c0_i32_1 = arith.constant 0 : i32
    return %c0_i32, %c0_i32_0 : i32, i32
  }
  func.func @transform_4(%arg0: i32) -> (i32, i32) {
    %c0_i32 = arith.constant 0 : i32
    %c0_i32_0 = arith.constant 0 : i32
    %c0_i32_1 = arith.constant 0 : i32
    return %c0_i32, %c0_i32_0 : i32, i32
  }
  func.func @transform_5(%arg0: i32) -> (i32, i32) {
    %c0_i32 = arith.constant 0 : i32
    %c0_i32_0 = arith.constant 0 : i32
    %c0_i32_1 = arith.constant 0 : i32
    return %c0_i32, %c0_i32_0 : i32, i32
  }
  func.func @transform_6(%arg0: i32) -> (i32, i32) {
    %c0_i32 = arith.constant 0 : i32
    %c0_i32_0 = arith.constant 0 : i32
    %c0_i32_1 = arith.constant 0 : i32
    return %c0_i32, %c0_i32_0 : i32, i32
  }
  func.func @transform_7(%arg0: i32) -> (i32, i32) {
    %c0_i32 = arith.constant 0 : i32
    %c0_i32_0 = arith.constant 0 : i32
    %c0_i32_1 = arith.constant 0 : i32
    return %c0_i32, %c0_i32_0 : i32, i32
  }
  func.func @transform_8(%arg0: i32) -> (i32, i32) {
    %c0_i32 = arith.constant 0 : i32
    %c0_i32_0 = arith.constant 0 : i32
    %c0_i32_1 = arith.constant 0 : i32
    return %c0_i32, %c0_i32_0 : i32, i32
  }
  func.func @transform_9(%arg0: i32) -> (i32, i32) {
    %c0_i32 = arith.constant 0 : i32
    %c0_i32_0 = arith.constant 0 : i32
    %c0_i32_1 = arith.constant 0 : i32
    return %c0_i32, %c0_i32_0 : i32, i32
  }
  func.func @transform_10(%arg0: i32) -> (i32, i32) {
    %c0_i32 = arith.constant 0 : i32
    %c0_i32_0 = arith.constant 0 : i32
    return %arg0, %c0_i32 : i32, i32
  }
}

</mosaic_0001>

<llo_original>
// kernel: tpu_custom_call.1
$region0: #{tpu_custom_call.1}
  #allocation0 [shape = 'u32[]', space=smem, size = 0x4, offset = 0x4, fixed_abs, tag = 'smem constant byte address 0x4 - core index']
  #allocation1 [shape = 'u32[144,128]{1,0:T(1,128)}', space=vmem, size = 0x12000, scoped, tag = 'internal scratch']
  %s0 = inlined_call_operand.vmem [shape: f32[16,32], index: 0, kind: input, shape index: {}]
  %s1 = inlined_call_operand.vmem [shape: bf16[16,320], index: 1, kind: input, shape index: {}]
  %s2 = inlined_call_operand.vmem [shape: f32[32,321], index: 2, kind: input, shape index: {}]
  %s3 = inlined_call_operand.vmem [shape: f32[1,321], index: 3, kind: input, shape index: {}]
  %s4 = inlined_call_operand.vmem [shape: f32[320,10], index: 4, kind: input, shape index: {}]
  %s5 = inlined_call_operand.vmem [shape: f32[10,320], index: 5, kind: input, shape index: {}]
  %s6 = inlined_call_operand.vmem [shape: f32[320,32], index: 6, kind: input, shape index: {}]
  %s7 = inlined_call_operand.vmem [shape: f32[32,8], index: 7, kind: input, shape index: {}]
  %s8 = inlined_call_operand.vmem [shape: f32[8,32], index: 8, kind: input, shape index: {}]
  %s9 = inlined_call_operand.vmem [shape: f32[2,32], index: 9, kind: input, shape index: {}]
  %s10 = inlined_call_operand.hbm [shape: f32[16,32], index: 10, kind: output, shape index: {}]
  %s11 = sld [smem:[#allocation0]]
  $region73: #{tpu_custom_call.1} parent=0
    _
  %s13 = ssub.s32 1, %s11
  %s14 = scalar_select 0, %s13, %s11
  $region1: #{tpu_custom_call.1} parent=0
    #allocation2 [shape = 'u8[8192]{0}', space=vmem, size = 0x2000, scoped, tag = 'output window, operand 0']
    #allocation3 [shape = 's32[2]{0}', space=sflag, size = 0x8, scoped, tag = 'scoped memory for tpu_custom_call.1']
    %15 = vsyncpa [#allocation3], 0
    %s16 = scalar_lea.sflag [#allocation3], 1
    %17 = vsyncpa %s16, 0
    loop: start=0, step=1, limit=4
    $region2: #{tpu_custom_call.1} parent=1 // loop_pre_header
      _
    $region3: #{tpu_custom_call.1} parent=1 // loop_header
      %s19 = sphi 0, %s23
      %p20 = scmp.ge.s32.totalorder %s19, 4
      %s29 = sphi 0, %s31
      %s32 = sphi 0, %s29
      %s33 = sphi 0, %s32
      %s49 = sphi 0, %s33
      %s55 = sphi 0, %s57
      %s58 = sphi 0, %s55
      %s59 = sphi 0, %s58
      %s75 = sphi 0, %s59
      %s79 = sphi 0, %s79
      %s81 = sphi 0, %s79
      %s82 = sphi 0, %s81
      %s96 = sphi 0, %s82
      %s100 = sphi 0, %s100
      %s102 = sphi 0, %s100
      %s103 = sphi 0, %s102
      %s117 = sphi 0, %s103
      %s121 = sphi 0, %s121
      %s123 = sphi 0, %s121
      %s124 = sphi 0, %s123
      %s138 = sphi 0, %s124
      %s142 = sphi 0, %s142
      %s144 = sphi 0, %s142
      %s145 = sphi 0, %s144
      %s159 = sphi 0, %s145
      %s163 = sphi 0, %s163
      %s165 = sphi 0, %s163
      %s166 = sphi 0, %s165
      %s180 = sphi 0, %s166
      %s184 = sphi 0, %s184
      %s186 = sphi 0, %s184
      %s187 = sphi 0, %s186
      %s201 = sphi 0, %s187
      %s205 = sphi 0, %s205
      %s207 = sphi 0, %s205
      %s208 = sphi 0, %s207
      %s222 = sphi 0, %s208
      %s226 = sphi 0, %s226
      %s228 = sphi 0, %s226
      %s229 = sphi 0, %s228
      %s243 = sphi 0, %s229
      %s249 = sphi 0, %s251
      %s252 = sphi 0, %s249
      %s253 = sphi 0, %s252
      %s269 = sphi 0, %s253
    $region4: #{tpu_custom_call.1} parent=1 // loop_header_branch
      %22 = sbr.rel (%p20) target = $region8
    $region5: #{tpu_custom_call.1} parent=1 // loop_body
      %s24 = ssub.s32 %s19, 1
      %s25 = ssub.s32 %s19, 2
      %s26 = sadd.s32 %s19, 1
      %s27 = ssub.s32 %s19, %s26
      %p28 = scmp.eq.s32.totalorder %s27, 0
      %s30 = sadd.s32 %s29, 1
      %s31 = scalar_select %p28, %s29, %s30
      %p34 = pneg %p28
      %p35 = scmp.eq.s32.totalorder %s19, 1
      %p36 = por %p34, %p35
      %p37 = scmp.ne.s32.totalorder %s29, %s32
      %p38 = scmp.eq.s32.totalorder %s19, 0
      %p39 = por %p37, %p38
      %p40 = scmp.ne.s32.totalorder %s29, %s32
      %p41 = scmp.eq.s32.totalorder %s24, 1
      %p42 = por %p40, %p41
      %p43 = scmp.ne.s32.totalorder %s32, %s33
      %p44 = scmp.eq.s32.totalorder %s24, 0
      %p45 = por %p43, %p44
      %p46 = scmp.ne.s32.totalorder %s32, %s33
      %p47 = scmp.eq.s32.totalorder %s25, 1
      %p48 = por %p46, %p47
      %p50 = scmp.ne.s32.totalorder %s33, %s49
      %p51 = scmp.eq.s32.totalorder %s25, 0
      %p52 = por %p50, %p51
      %s53 = ssub.s32 %s19, %s26
      %p54 = scmp.eq.s32.totalorder %s53, 0
      %s56 = sadd.s32 %s55, 1
      %s57 = scalar_select %p54, %s55, %s56
      %p60 = pneg %p54
      %p61 = scmp.eq.s32.totalorder %s19, 1
      %p62 = por %p60, %p61
      %p63 = scmp.ne.s32.totalorder %s55, %s58
      %p64 = scmp.eq.s32.totalorder %s19, 0
      %p65 = por %p63, %p64
      %p66 = scmp.ne.s32.totalorder %s55, %s58
      %p67 = scmp.eq.s32.totalorder %s24, 1
      %p68 = por %p66, %p67
      %p69 = scmp.ne.s32.totalorder %s58, %s59
      %p70 = scmp.eq.s32.totalorder %s24, 0
      %p71 = por %p69, %p70
      %p72 = scmp.ne.s32.totalorder %s58, %s59
      %p73 = scmp.eq.s32.totalorder %s25, 1
      %p74 = por %p72, %p73
      %p76 = scmp.ne.s32.totalorder %s59, %s75
      %p77 = scmp.eq.s32.totalorder %s25, 0
      %p78 = por %p76, %p77
      %s80 = sadd.s32 %s79, 1
      %p83 = scmp.eq.s32.totalorder %s19, 1
      %p84 = scmp.ne.s32.totalorder %s79, %s81
      %p85 = scmp.eq.s32.totalorder %s19, 0
      %p86 = por %p84, %p85
      %p87 = scmp.ne.s32.totalorder %s79, %s81
      %p88 = scmp.eq.s32.totalorder %s24, 1
      %p89 = por %p87, %p88
      %p90 = scmp.ne.s32.totalorder %s81, %s82
      %p91 = scmp.eq.s32.totalorder %s24, 0
      %p92 = por %p90, %p91
      %p93 = scmp.ne.s32.totalorder %s81, %s82
      %p94 = scmp.eq.s32.totalorder %s25, 1
      %p95 = por %p93, %p94
      %p97 = scmp.ne.s32.totalorder %s82, %s96
      %p98 = scmp.eq.s32.totalorder %s25, 0
      %p99 = por %p97, %p98
      %s101 = sadd.s32 %s100, 1
      %p104 = scmp.eq.s32.totalorder %s19, 1
      %p105 = scmp.ne.s32.totalorder %s100, %s102
      %p106 = scmp.eq.s32.totalorder %s19, 0
      %p107 = por %p105, %p106
      %p108 = scmp.ne.s32.totalorder %s100, %s102
      %p109 = scmp.eq.s32.totalorder %s24, 1
      %p110 = por %p108, %p109
      %p111 = scmp.ne.s32.totalorder %s102, %s103
      %p112 = scmp.eq.s32.totalorder %s24, 0
      %p113 = por %p111, %p112
      %p114 = scmp.ne.s32.totalorder %s102, %s103
      %p115 = scmp.eq.s32.totalorder %s25, 1
      %p116 = por %p114, %p115
      %p118 = scmp.ne.s32.totalorder %s103, %s117
      %p119 = scmp.eq.s32.totalorder %s25, 0
      %p120 = por %p118, %p119
      %s122 = sadd.s32 %s121, 1
      %p125 = scmp.eq.s32.totalorder %s19, 1
      %p126 = scmp.ne.s32.totalorder %s121, %s123
      %p127 = scmp.eq.s32.totalorder %s19, 0
      %p128 = por %p126, %p127
      %p129 = scmp.ne.s32.totalorder %s121, %s123
      %p130 = scmp.eq.s32.totalorder %s24, 1
      %p131 = por %p129, %p130
      %p132 = scmp.ne.s32.totalorder %s123, %s124
      %p133 = scmp.eq.s32.totalorder %s24, 0
      %p134 = por %p132, %p133
      %p135 = scmp.ne.s32.totalorder %s123, %s124
      %p136 = scmp.eq.s32.totalorder %s25, 1
      %p137 = por %p135, %p136
      %p139 = scmp.ne.s32.totalorder %s124, %s138
      %p140 = scmp.eq.s32.totalorder %s25, 0
      %p141 = por %p139, %p140
      %s143 = sadd.s32 %s142, 1
      %p146 = scmp.eq.s32.totalorder %s19, 1
      %p147 = scmp.ne.s32.totalorder %s142, %s144
      %p148 = scmp.eq.s32.totalorder %s19, 0
      %p149 = por %p147, %p148
      %p150 = scmp.ne.s32.totalorder %s142, %s144
      %p151 = scmp.eq.s32.totalorder %s24, 1
      %p152 = por %p150, %p151
      %p153 = scmp.ne.s32.totalorder %s144, %s145
      %p154 = scmp.eq.s32.totalorder %s24, 0
      %p155 = por %p153, %p154
      %p156 = scmp.ne.s32.totalorder %s144, %s145
      %p157 = scmp.eq.s32.totalorder %s25, 1
      %p158 = por %p156, %p157
      %p160 = scmp.ne.s32.totalorder %s145, %s159
      %p161 = scmp.eq.s32.totalorder %s25, 0
      %p162 = por %p160, %p161
      %s164 = sadd.s32 %s163, 1
      %p167 = scmp.eq.s32.totalorder %s19, 1
      %p168 = scmp.ne.s32.totalorder %s163, %s165
      %p169 = scmp.eq.s32.totalorder %s19, 0
      %p170 = por %p168, %p169
      %p171 = scmp.ne.s32.totalorder %s163, %s165
      %p172 = scmp.eq.s32.totalorder %s24, 1
      %p173 = por %p171, %p172
      %p174 = scmp.ne.s32.totalorder %s165, %s166
      %p175 = scmp.eq.s32.totalorder %s24, 0
      %p176 = por %p174, %p175
      %p177 = scmp.ne.s32.totalorder %s165, %s166
      %p178 = scmp.eq.s32.totalorder %s25, 1
      %p179 = por %p177, %p178
      %p181 = scmp.ne.s32.totalorder %s166, %s180
      %p182 = scmp.eq.s32.totalorder %s25, 0
      %p183 = por %p181, %p182
      %s185 = sadd.s32 %s184, 1
      %p188 = scmp.eq.s32.totalorder %s19, 1
      %p189 = scmp.ne.s32.totalorder %s184, %s186
      %p190 = scmp.eq.s32.totalorder %s19, 0
      %p191 = por %p189, %p190
      %p192 = scmp.ne.s32.totalorder %s184, %s186
      %p193 = scmp.eq.s32.totalorder %s24, 1
      %p194 = por %p192, %p193
      %p195 = scmp.ne.s32.totalorder %s186, %s187
      %p196 = scmp.eq.s32.totalorder %s24, 0
      %p197 = por %p195, %p196
      %p198 = scmp.ne.s32.totalorder %s186, %s187
      %p199 = scmp.eq.s32.totalorder %s25, 1
      %p200 = por %p198, %p199
      %p202 = scmp.ne.s32.totalorder %s187, %s201
      %p203 = scmp.eq.s32.totalorder %s25, 0
      %p204 = por %p202, %p203
      %s206 = sadd.s32 %s205, 1
      %p209 = scmp.eq.s32.totalorder %s19, 1
      %p210 = scmp.ne.s32.totalorder %s205, %s207
      %p211 = scmp.eq.s32.totalorder %s19, 0
      %p212 = por %p210, %p211
      %p213 = scmp.ne.s32.totalorder %s205, %s207
      %p214 = scmp.eq.s32.totalorder %s24, 1
      %p215 = por %p213, %p214
      %p216 = scmp.ne.s32.totalorder %s207, %s208
      %p217 = scmp.eq.s32.totalorder %s24, 0
      %p218 = por %p216, %p217
      %p219 = scmp.ne.s32.totalorder %s207, %s208
      %p220 = scmp.eq.s32.totalorder %s25, 1
      %p221 = por %p219, %p220
      %p223 = scmp.ne.s32.totalorder %s208, %s222
      %p224 = scmp.eq.s32.totalorder %s25, 0
      %p225 = por %p223, %p224
      %s227 = sadd.s32 %s226, 1
      %p230 = scmp.eq.s32.totalorder %s19, 1
      %p231 = scmp.ne.s32.totalorder %s226, %s228
      %p232 = scmp.eq.s32.totalorder %s19, 0
      %p233 = por %p231, %p232
      %p234 = scmp.ne.s32.totalorder %s226, %s228
      %p235 = scmp.eq.s32.totalorder %s24, 1
      %p236 = por %p234, %p235
      %p237 = scmp.ne.s32.totalorder %s228, %s229
      %p238 = scmp.eq.s32.totalorder %s24, 0
      %p239 = por %p237, %p238
      %p240 = scmp.ne.s32.totalorder %s228, %s229
      %p241 = scmp.eq.s32.totalorder %s25, 1
      %p242 = por %p240, %p241
      %p244 = scmp.ne.s32.totalorder %s229, %s243
      %p245 = scmp.eq.s32.totalorder %s25, 0
      %p246 = por %p244, %p245
      %s247 = ssub.s32 %s19, %s26
      %p248 = scmp.eq.s32.totalorder %s247, 0
      %s250 = sadd.s32 %s249, 1
      %s251 = scalar_select %p248, %s249, %s250
      %p254 = pneg %p248
      %p255 = scmp.eq.s32.totalorder %s19, 1
      %p256 = por %p254, %p255
      %p257 = scmp.ne.s32.totalorder %s249, %s252
      %p258 = scmp.eq.s32.totalorder %s19, 0
      %p259 = por %p257, %p258
      %p260 = scmp.ne.s32.totalorder %s249, %s252
      %p261 = scmp.eq.s32.totalorder %s24, 1
      %p262 = por %p260, %p261
      %p263 = scmp.ne.s32.totalorder %s252, %s253
      %p264 = scmp.eq.s32.totalorder %s24, 0
      %p265 = por %p263, %p264
      %p266 = scmp.ne.s32.totalorder %s252, %s253
      %p267 = scmp.eq.s32.totalorder %s25, 1
      %p268 = por %p266, %p267
      %p270 = scmp.ne.s32.totalorder %s253, %s269
      %p271 = scmp.eq.s32.totalorder %s25, 0
      %p272 = por %p270, %p271
      %p273 = scmp.le.s32.totalorder 1, %s19
      %p274 = scmp.lt.s32.totalorder %s19, 3
      %p275 = pnand %p273, %p274
      %p276 = pneg %p275
      // Predicated region
      $region9: #{tpu_custom_call.1} parent=5 // pred_check
        _
      $region10: #{tpu_custom_call.1} parent=5 // pred_check_branch
        %278 = sbr.rel (%p275) target = $region12
      $region11: #{tpu_custom_call.1} parent=5 // pred_region
        %s279 = ssub.s32 %s19, 1
        // Predicated region
        $region13: #{tpu_custom_call.1} parent=11 // pred_check
          %p280 = pneg %p92
        $region14: #{tpu_custom_call.1} parent=11 // pred_check_branch
          %282 = sbr.rel (%p280) target = $region16
        $region15: #{tpu_custom_call.1} parent=11 // pred_region
          _
        $region16: #{tpu_custom_call.1} parent=11 // pred_fallthru
          _
        // Predicated region
        $region17: #{tpu_custom_call.1} parent=11 // pred_check
          %p283 = pneg %p113
        $region18: #{tpu_custom_call.1} parent=11 // pred_check_branch
          %285 = sbr.rel (%p283) target = $region20
        $region19: #{tpu_custom_call.1} parent=11 // pred_region
          _
        $region20: #{tpu_custom_call.1} parent=11 // pred_fallthru
          _
        // Predicated region
        $region21: #{tpu_custom_call.1} parent=11 // pred_check
          %p286 = pneg %p134
        $region22: #{tpu_custom_call.1} parent=11 // pred_check_branch
          %288 = sbr.rel (%p286) target = $region24
        $region23: #{tpu_custom_call.1} parent=11 // pred_region
          _
        $region24: #{tpu_custom_call.1} parent=11 // pred_fallthru
          _
        // Predicated region
        $region25: #{tpu_custom_call.1} parent=11 // pred_check
          %p289 = pneg %p155
        $region26: #{tpu_custom_call.1} parent=11 // pred_check_branch
          %291 = sbr.rel (%p289) target = $region28
        $region27: #{tpu_custom_call.1} parent=11 // pred_region
          _
        $region28: #{tpu_custom_call.1} parent=11 // pred_fallthru
          _
        // Predicated region
        $region29: #{tpu_custom_call.1} parent=11 // pred_check
          %p292 = pneg %p176
        $region30: #{tpu_custom_call.1} parent=11 // pred_check_branch
          %294 = sbr.rel (%p292) target = $region32
        $region31: #{tpu_custom_call.1} parent=11 // pred_region
          _
        $region32: #{tpu_custom_call.1} parent=11 // pred_fallthru
          _
        // Predicated region
        $region33: #{tpu_custom_call.1} parent=11 // pred_check
          %p295 = pneg %p197
        $region34: #{tpu_custom_call.1} parent=11 // pred_check_branch
          %297 = sbr.rel (%p295) target = $region36
        $region35: #{tpu_custom_call.1} parent=11 // pred_region
          _
        $region36: #{tpu_custom_call.1} parent=11 // pred_fallthru
          _
        // Predicated region
        $region37: #{tpu_custom_call.1} parent=11 // pred_check
          %p298 = pneg %p218
        $region38: #{tpu_custom_call.1} parent=11 // pred_check_branch
          %300 = sbr.rel (%p298) target = $region40
        $region39: #{tpu_custom_call.1} parent=11 // pred_region
          _
        $region40: #{tpu_custom_call.1} parent=11 // pred_fallthru
          _
        // Predicated region
        $region41: #{tpu_custom_call.1} parent=11 // pred_check
          %p301 = pneg %p239
        $region42: #{tpu_custom_call.1} parent=11 // pred_check_branch
          %303 = sbr.rel (%p301) target = $region44
        $region43: #{tpu_custom_call.1} parent=11 // pred_region
          _
        $region44: #{tpu_custom_call.1} parent=11 // pred_fallthru
          _
      $region12: #{tpu_custom_call.1} parent=5 // pred_fallthru
        _
      %p304 = scmp.lt.s32.totalorder %s19, 2
      // Predicated region
      $region45: #{tpu_custom_call.1} parent=5 // pred_check
        %p305 = pneg %p304
      $region46: #{tpu_custom_call.1} parent=5 // pred_check_branch
        %307 = sbr.rel (%p305) target = $region48
      $region47: #{tpu_custom_call.1} parent=5 // pred_region
        // Predicated region
        $region49: #{tpu_custom_call.1} parent=47 // pred_check
          %p308 = pneg %p39
        $region50: #{tpu_custom_call.1} parent=47 // pred_check_branch
          %310 = sbr.rel (%p308) target = $region52
        $region51: #{tpu_custom_call.1} parent=47 // pred_region
          %p311 = scmp.lt.s32.totalorder %s19, 1
          %s312 = scalar_select %p311, %s19, 1
          %s313 = smul.addr %s312, 8
          %s314 = scalar_lea.vmem %s0, %s313
        $region52: #{tpu_custom_call.1} parent=47 // pred_fallthru
          _
        // Predicated region
        $region53: #{tpu_custom_call.1} parent=47 // pred_check
          %p315 = pneg %p65
        $region54: #{tpu_custom_call.1} parent=47 // pred_check_branch
          %317 = sbr.rel (%p315) target = $region56
        $region55: #{tpu_custom_call.1} parent=47 // pred_region
          %p318 = scmp.lt.s32.totalorder %s19, 1
          %s319 = scalar_select %p318, %s19, 1
          %s320 = smul.addr %s319, 3
          %s321 = smul.addr %s320, 4
          %s322 = scalar_lea.vmem %s1, %s321
        $region56: #{tpu_custom_call.1} parent=47 // pred_fallthru
          _
      $region48: #{tpu_custom_call.1} parent=5 // pred_fallthru
        _
      %p323 = scmp.le.s32.totalorder 1, %s19
      %p324 = scmp.lt.s32.totalorder %s19, 3
      %p325 = pnand %p323, %p324
      %p326 = pneg %p325
      // Predicated region
      $region57: #{tpu_custom_call.1} parent=5 // pred_check
        _
      $region58: #{tpu_custom_call.1} parent=5 // pred_check_branch
        %328 = sbr.rel (%p325) target = $region60
      $region59: #{tpu_custom_call.1} parent=5 // pred_region
        %s329 = ssub.s32 %s19, 1
        %p330 = scmp.lt.s32.totalorder %s24, 1
        %s331 = scalar_select %p330, %s24, 1
        %s332 = smul.addr %s331, 8
        %s333 = scalar_lea.vmem %s0, %s332
        %p334 = pneg %p45
        %p335 = pneg %p42
        %p336 = scmp.lt.s32.totalorder %s24, 1
        %s337 = scalar_select %p336, %s24, 1
        %s338 = smul.addr %s337, 3
        %s339 = smul.addr %s338, 4
        %s340 = scalar_lea.vmem %s1, %s339
        %p341 = pneg %p71
        %p342 = pneg %p68
        %p343 = pneg %p92
        %p344 = pneg %p89
        %p345 = pneg %p113
        %p346 = pneg %p110
        %p347 = pneg %p134
        %p348 = pneg %p131
        %p349 = pneg %p155
        %p350 = pneg %p152
        %p351 = pneg %p176
        %p352 = pneg %p173
        %p353 = pneg %p197
        %p354 = pneg %p194
        %p355 = pneg %p218
        %p356 = pneg %p215
        %p357 = pneg %p239
        %p358 = pneg %p236
        %p359 = pneg %p265
        %p360 = pneg %p262
        %s361 = sand.u32 %s252, 1
        %s362 = scalar_lea.sflag [#allocation3], %s361
        %s363 = sand.u32 %s252, 1
        %s364 = smul.addr %s363, 8
        %s365 = scalar_lea.vmem [#allocation2], %s364
        %p366 = scmp.lt.s32.totalorder %s24, 1
        %s367 = scalar_select %p366, %s24, 1
        %s368 = smul.addr %s367, 8
        %s369 = scalar_lea.vmem %s0, %s368
        %p370 = scmp.lt.s32.totalorder %s24, 1
        %s371 = scalar_select %p370, %s24, 1
        %s372 = smul.addr %s371, 3
        %s373 = smul.addr %s372, 4
        %s374 = scalar_lea.vmem %s1, %s373
        %v375 = vld [vmem:[%s369] sm:$0xff]
        %v376 = vld [vmem:[%s374] sm:$0xff]
        %v377 = vld [vmem:[%s374 + $0x8] sm:$0xf]
        %v378 = vunpack.c.l.bf16 %v376
        %v379 = vunpack.c.h.bf16 %v376
        %v380 = vunpack.c.l.bf16 %v377
        %v381 = vld [vmem:[%s2] sm:$0xff]
        %v382 = vld [vmem:[%s2 + $0x8] sm:$0xff]
        %v383 = vld [vmem:[%s2 + $0x10] sm:$0xff]
        %v384 = vld [vmem:[%s2 + $0x18] sm:$0xff]
        %v385 = vld [vmem:[%s2 + $0x20] sm:$0xff]
        %v386 = vld [vmem:[%s2 + $0x28] sm:$0xff]
        %v387 = vld [vmem:[%s2 + $0x30] sm:$0xff]
        %v388 = vld [vmem:[%s2 + $0x38] sm:$0xff]
        %v389 = vld [vmem:[%s2 + $0x40] sm:$0xff]
        %v390 = vld [vmem:[%s2 + $0x48] sm:$0xff]
        %v391 = vld [vmem:[%s2 + $0x50] sm:$0xff]
        %v392 = vld [vmem:[%s2 + $0x58] sm:$0xff]
        %v393 = vld [vmem:[%s3] sm:$0x7]
        %v395 = vlaneseq
        %v396 = vshrl.u32 %v395, 7
        %v397 = vsub.s32 0, %v396
        %v398 = vrot.slane %v393, %v397
        %v399 = vlaneseq
        %v400 = vshrl.u32 %v399, 7
        %v401 = vsub.s32 1, %v400
        %v402 = vrot.slane %v393, %v401
        %v403 = vlaneseq
        %v404 = vshrl.u32 %v403, 7
        %v405 = vsub.s32 2, %v404
        %v406 = vrot.slane %v393, %v405
        %vm410 = vcmask 261120
        %v412 = vsel %vm410, %v375, 0
        %414 = vmatprep.subr.mxu0 %v382
        %415 = vmatpush1.msra.mxu0 %v381
        %416 = vmatprep.subr.mxu0 %v385
        %417 = vmatpush1.msra.mxu0 %v384
        %418 = vmatprep.subr.mxu0 %v388
        %419 = vmatpush1.msra.mxu0 %v387
        %420 = vmatprep.subr.mxu0 %v391
        %421 = vmatpush1.msra.mxu0 %v390
        %422 = vmatprep.subr.mxu0 0.0
        %423 = vmatpush1.msra.mxu0 0.0
        %424 = vmatprep.subr.mxu0 0.0
        %425 = vmatpush1.msra.mxu0 0.0
        %426 = vmatprep.subr.mxu0 0.0
        %427 = vmatpush1.msra.mxu0 0.0
        %428 = vmatprep.subr.mxu0 0.0
        %429 = vmatpush1.msra.mxu0 0.0
        %430 = vmatprep.subr.mxu0 0.0
        %431 = vmatpush1.msra.mxu0 0.0
        %432 = vmatprep.subr.mxu0 0.0
        %433 = vmatpush1.msra.mxu0 0.0
        %434 = vmatprep.subr.mxu0 0.0
        %435 = vmatpush1.msra.mxu0 0.0
        %436 = vmatprep.subr.mxu0 0.0
        %437 = vmatpush1.msra.mxu0 0.0
        %438 = vmatprep.subr.mxu0 0.0
        %439 = vmatpush1.msra.mxu0 0.0
        %440 = vmatprep.subr.mxu0 0.0
        %441 = vmatpush1.msra.mxu0 0.0
        %442 = vmatprep.subr.mxu0 0.0
        %443 = vmatpush1.msra.mxu0 0.0
        %444 = vmatprep.subr.mxu0 0.0
        %445 = vmatpush1.msra.mxu0 0.0
        %446 = vmatprep.subr.mxu0 0.0
        %447 = vmatpush1.msra.mxu0 0.0
        %448 = vmatprep.subr.mxu0 0.0
        %449 = vmatpush1.msra.mxu0 0.0
        %450 = vmatprep.subr.mxu0 0.0
        %451 = vmatpush1.msra.mxu0 0.0
        %452 = vmatprep.subr.mxu0 0.0
        %453 = vmatpush1.msra.mxu0 0.0
        %454 = vmatprep.subr.mxu0 0.0
        %455 = vmatpush1.msra.mxu0 0.0
        %456 = vmatprep.subr.mxu0 0.0
        %457 = vmatpush1.msra.mxu0 0.0
        %458 = vmatprep.subr.mxu0 0.0
        %459 = vmatpush1.msra.mxu0 0.0
        %460 = vmatprep.subr.mxu0 0.0
        %461 = vmatpush1.msra.mxu0 0.0
        %462 = vmatprep.subr.mxu0 0.0
        %463 = vmatpush1.msra.mxu0 0.0
        %464 = vmatprep.subr.mxu0 0.0
        %465 = vmatpush1.msra.mxu0 0.0
        %466 = vmatprep.subr.mxu0 0.0
        %467 = vmatpush1.msra.mxu0 0.0
        %468 = vmatprep.subr.mxu0 0.0
        %469 = vmatpush1.msra.mxu0 0.0
        %470 = vmatprep.subr.mxu0 0.0
        %471 = vmatpush1.msra.mxu0 0.0
        %472 = vmatprep.subr.mxu0 0.0
        %473 = vmatpush1.msra.mxu0 0.0
        %474 = vmatprep.subr.mxu0 0.0
        %475 = vmatpush1.msra.mxu0 0.0
        %476 = vmatprep.subr.mxu0 0.0
        %477 = vmatpush1.msra.mxu0 0.0
        %478 = vmatprep.mubr.f32.mxu0 0.0
        %479 = vmatmul.mubr.f32.gmra.mrb[0].mxu0 %v412
        %v480 = vpop.f32.mrb[0].mxu0
        %v481 = vadd.f32 %v398, %v480
        %v482 = vpop.f32.mrb[0].mxu0
        %v483 = vadd.f32 %v402, %v482
        %484 = vdwg.mxu0
        %485 = vmatprep.subr.mxu0 0.0
        %486 = vmatpush1.msra.mxu0 %v383
        %487 = vmatprep.subr.mxu0 0.0
        %488 = vmatpush1.msra.mxu0 %v386
        %489 = vmatprep.subr.mxu0 0.0
        %490 = vmatpush1.msra.mxu0 %v389
        %491 = vmatprep.subr.mxu0 0.0
        %492 = vmatpush1.msra.mxu0 %v392
        %493 = vmatprep.subr.mxu0 0.0
        %494 = vmatpush1.msra.mxu0 0.0
        %495 = vmatprep.subr.mxu0 0.0
        %496 = vmatpush1.msra.mxu0 0.0
        %497 = vmatprep.subr.mxu0 0.0
        %498 = vmatpush1.msra.mxu0 0.0
        %499 = vmatprep.subr.mxu0 0.0
        %500 = vmatpush1.msra.mxu0 0.0
        %501 = vmatprep.subr.mxu0 0.0
        %502 = vmatpush1.msra.mxu0 0.0
        %503 = vmatprep.subr.mxu0 0.0
        %504 = vmatpush1.msra.mxu0 0.0
        %505 = vmatprep.subr.mxu0 0.0
        %506 = vmatpush1.msra.mxu0 0.0
        %507 = vmatprep.subr.mxu0 0.0
        %508 = vmatpush1.msra.mxu0 0.0
        %509 = vmatprep.subr.mxu0 0.0
        %510 = vmatpush1.msra.mxu0 0.0
        %511 = vmatprep.subr.mxu0 0.0
        %512 = vmatpush1.msra.mxu0 0.0
        %513 = vmatprep.subr.mxu0 0.0
        %514 = vmatpush1.msra.mxu0 0.0
        %515 = vmatprep.subr.mxu0 0.0
        %516 = vmatpush1.msra.mxu0 0.0
        %517 = vmatprep.subr.mxu0 0.0
        %518 = vmatpush1.msra.mxu0 0.0
        %519 = vmatprep.subr.mxu0 0.0
        %520 = vmatpush1.msra.mxu0 0.0
        %521 = vmatprep.subr.mxu0 0.0
        %522 = vmatpush1.msra.mxu0 0.0
        %523 = vmatprep.subr.mxu0 0.0
        %524 = vmatpush1.msra.mxu0 0.0
        %525 = vmatprep.subr.mxu0 0.0
        %526 = vmatpush1.msra.mxu0 0.0
        %527 = vmatprep.subr.mxu0 0.0
        %528 = vmatpush1.msra.mxu0 0.0
        %529 = vmatprep.subr.mxu0 0.0
        %530 = vmatpush1.msra.mxu0 0.0
        %531 = vmatprep.subr.mxu0 0.0
        %532 = vmatpush1.msra.mxu0 0.0
        %533 = vmatprep.subr.mxu0 0.0
        %534 = vmatpush1.msra.mxu0 0.0
        %535 = vmatprep.subr.mxu0 0.0
        %536 = vmatpush1.msra.mxu0 0.0
        %537 = vmatprep.subr.mxu0 0.0
        %538 = vmatpush1.msra.mxu0 0.0
        %539 = vmatprep.subr.mxu0 0.0
        %540 = vmatpush1.msra.mxu0 0.0
        %541 = vmatprep.subr.mxu0 0.0
        %542 = vmatpush1.msra.mxu0 0.0
        %543 = vmatprep.subr.mxu0 0.0
        %544 = vmatpush1.msra.mxu0 0.0
        %545 = vmatprep.subr.mxu0 0.0
        %546 = vmatpush1.msra.mxu0 0.0
        %547 = vmatprep.subr.mxu0 0.0
        %548 = vmatpush1.msra.mxu0 0.0
        %549 = vmatprep.mubr.f32.mxu0 0.0
        %550 = vmatmul.mubr.f32.gmra.mrb[0].mxu0 %v412
        %v551 = vpop.f32.mrb[0].mxu0
        %v552 = vadd.f32 %v406, %v551
        %v553 = vpop.f32.mrb[0].mxu0
        %554 = vdwg.mxu0
        %v555 = vmul.f32 %v378, %v481
        %v556 = vmul.f32 %v379, %v483
        %v557 = vmul.f32 %v380, %v552
        %v558 = vld [vmem:[%s4] sm:$0xff]
        %v559 = vld [vmem:[%s4 + $0x8] sm:$0xff]
        %v560 = vld [vmem:[%s4 + $0x10] sm:$0xff]
        %v561 = vld [vmem:[%s4 + $0x18] sm:$0xff]
        %v562 = vld [vmem:[%s4 + $0x20] sm:$0xff]
        %v563 = vld [vmem:[%s4 + $0x28] sm:$0xff]
        %v564 = vld [vmem:[%s4 + $0x30] sm:$0xff]
        %v565 = vld [vmem:[%s4 + $0x38] sm:$0xff]
        %v566 = vld [vmem:[%s4 + $0x40] sm:$0xff]
        %v567 = vld [vmem:[%s4 + $0x48] sm:$0xff]
        %v568 = vld [vmem:[%s4 + $0x50] sm:$0xff]
        %v569 = vld [vmem:[%s4 + $0x58] sm:$0xff]
        %v570 = vld [vmem:[%s4 + $0x60] sm:$0xff]
        %v571 = vld [vmem:[%s4 + $0x68] sm:$0xff]
        %v572 = vld [vmem:[%s4 + $0x70] sm:$0xff]
        %v573 = vld [vmem:[%s4 + $0x78] sm:$0xff]
        %v574 = vld [vmem:[%s4 + $0x80] sm:$0xff]
        %v575 = vld [vmem:[%s4 + $0x88] sm:$0xff]
        %v576 = vld [vmem:[%s4 + $0x90] sm:$0xff]
        %v577 = vld [vmem:[%s4 + $0x98] sm:$0xff]
        %v578 = vld [vmem:[%s4 + $0xa0] sm:$0xff]
        %v579 = vld [vmem:[%s4 + $0xa8] sm:$0xff]
        %v580 = vld [vmem:[%s4 + $0xb0] sm:$0xff]
        %v581 = vld [vmem:[%s4 + $0xb8] sm:$0xff]
        %v582 = vld [vmem:[%s4 + $0xc0] sm:$0xff]
        %v583 = vld [vmem:[%s4 + $0xc8] sm:$0xff]
        %v584 = vld [vmem:[%s4 + $0xd0] sm:$0xff]
        %v585 = vld [vmem:[%s4 + $0xd8] sm:$0xff]
        %v586 = vld [vmem:[%s4 + $0xe0] sm:$0xff]
        %v587 = vld [vmem:[%s4 + $0xe8] sm:$0xff]
        %v588 = vld [vmem:[%s4 + $0xf0] sm:$0xff]
        %v589 = vld [vmem:[%s4 + $0xf8] sm:$0xff]
        %v590 = vld [vmem:[%s4 + $0x100] sm:$0xff]
        %v591 = vld [vmem:[%s4 + $0x108] sm:$0xff]
        %v592 = vld [vmem:[%s4 + $0x110] sm:$0xff]
        %v593 = vld [vmem:[%s4 + $0x118] sm:$0xff]
        %v594 = vld [vmem:[%s4 + $0x120] sm:$0xff]
        %v595 = vld [vmem:[%s4 + $0x128] sm:$0xff]
        %v596 = vld [vmem:[%s4 + $0x130] sm:$0xff]
        %v597 = vld [vmem:[%s4 + $0x138] sm:$0xff]
        %vm598 = vcmask 523264
        %v600 = vsel %vm598, %v557, 0
        %602 = vmatprep.subr.mxu0 0.0
        %603 = vmatpush1.msra.mxu0 %v558
        %604 = vmatprep.subr.mxu0 0.0
        %605 = vmatpush1.msra.mxu0 %v559
        %606 = vmatprep.subr.mxu0 0.0
        %607 = vmatpush1.msra.mxu0 %v560
        %608 = vmatprep.subr.mxu0 0.0
        %609 = vmatpush1.msra.mxu0 %v561
        %610 = vmatprep.subr.mxu0 0.0
        %611 = vmatpush1.msra.mxu0 %v562
        %612 = vmatprep.subr.mxu0 0.0
        %613 = vmatpush1.msra.mxu0 %v563
        %614 = vmatprep.subr.mxu0 0.0
        %615 = vmatpush1.msra.mxu0 %v564
        %616 = vmatprep.subr.mxu0 0.0
        %617 = vmatpush1.msra.mxu0 %v565
        %618 = vmatprep.subr.mxu0 0.0
        %619 = vmatpush1.msra.mxu0 %v566
        %620 = vmatprep.subr.mxu0 0.0
        %621 = vmatpush1.msra.mxu0 %v567
        %622 = vmatprep.subr.mxu0 0.0
        %623 = vmatpush1.msra.mxu0 %v568
        %624 = vmatprep.subr.mxu0 0.0
        %625 = vmatpush1.msra.mxu0 %v569
        %626 = vmatprep.subr.mxu0 0.0
        %627 = vmatpush1.msra.mxu0 %v570
        %628 = vmatprep.subr.mxu0 0.0
        %629 = vmatpush1.msra.mxu0 %v571
        %630 = vmatprep.subr.mxu0 0.0
        %631 = vmatpush1.msra.mxu0 %v572
        %632 = vmatprep.subr.mxu0 0.0
        %633 = vmatpush1.msra.mxu0 %v573
        %634 = vmatprep.subr.mxu0 0.0
        %635 = vmatpush1.msra.mxu0 %v574
        %636 = vmatprep.subr.mxu0 0.0
        %637 = vmatpush1.msra.mxu0 %v575
        %638 = vmatprep.subr.mxu0 0.0
        %639 = vmatpush1.msra.mxu0 %v576
        %640 = vmatprep.subr.mxu0 0.0
        %641 = vmatpush1.msra.mxu0 %v577
        %642 = vmatprep.subr.mxu0 0.0
        %643 = vmatpush1.msra.mxu0 %v578
        %644 = vmatprep.subr.mxu0 0.0
        %645 = vmatpush1.msra.mxu0 %v579
        %646 = vmatprep.subr.mxu0 0.0
        %647 = vmatpush1.msra.mxu0 %v580
        %648 = vmatprep.subr.mxu0 0.0
        %649 = vmatpush1.msra.mxu0 %v581
        %650 = vmatprep.subr.mxu0 0.0
        %651 = vmatpush1.msra.mxu0 %v582
        %652 = vmatprep.subr.mxu0 0.0
        %653 = vmatpush1.msra.mxu0 %v583
        %654 = vmatprep.subr.mxu0 0.0
        %655 = vmatpush1.msra.mxu0 %v584
        %656 = vmatprep.subr.mxu0 0.0
        %657 = vmatpush1.msra.mxu0 %v585
        %658 = vmatprep.subr.mxu0 0.0
        %659 = vmatpush1.msra.mxu0 %v586
        %660 = vmatprep.subr.mxu0 0.0
        %661 = vmatpush1.msra.mxu0 %v587
        %662 = vmatprep.subr.mxu0 0.0
        %663 = vmatpush1.msra.mxu0 %v588
        %664 = vmatprep.subr.mxu0 0.0
        %665 = vmatpush1.msra.mxu0 %v589
        %666 = vmatprep.mubr.f32.mxu0 %v556
        %667 = vmatmul.mubr.f32.gmra.mrb[0].mxu0 %v555
        %v668 = vpop.f32.mrb[0].mxu0
        %v669 = vadd.f32 0.0, %v668
        %v670 = vpop.f32.mrb[0].mxu0
        %671 = vdwg.mxu0
        %672 = vmatprep.subr.mxu0 0.0
        %673 = vmatpush1.msra.mxu0 %v590
        %674 = vmatprep.subr.mxu0 0.0
        %675 = vmatpush1.msra.mxu0 %v591
        %676 = vmatprep.subr.mxu0 0.0
        %677 = vmatpush1.msra.mxu0 %v592
        %678 = vmatprep.subr.mxu0 0.0
        %679 = vmatpush1.msra.mxu0 %v593
        %680 = vmatprep.subr.mxu0 0.0
        %681 = vmatpush1.msra.mxu0 %v594
        %682 = vmatprep.subr.mxu0 0.0
        %683 = vmatpush1.msra.mxu0 %v595
        %684 = vmatprep.subr.mxu0 0.0
        %685 = vmatpush1.msra.mxu0 %v596
        %686 = vmatprep.subr.mxu0 0.0
        %687 = vmatpush1.msra.mxu0 %v597
        %688 = vmatprep.subr.mxu0 0.0
        %689 = vmatpush1.msra.mxu0 0.0
        %690 = vmatprep.subr.mxu0 0.0
        %691 = vmatpush1.msra.mxu0 0.0
        %692 = vmatprep.subr.mxu0 0.0
        %693 = vmatpush1.msra.mxu0 0.0
        %694 = vmatprep.subr.mxu0 0.0
        %695 = vmatpush1.msra.mxu0 0.0
        %696 = vmatprep.subr.mxu0 0.0
        %697 = vmatpush1.msra.mxu0 0.0
        %698 = vmatprep.subr.mxu0 0.0
        %699 = vmatpush1.msra.mxu0 0.0
        %700 = vmatprep.subr.mxu0 0.0
        %701 = vmatpush1.msra.mxu0 0.0
        %702 = vmatprep.subr.mxu0 0.0
        %703 = vmatpush1.msra.mxu0 0.0
        %704 = vmatprep.subr.mxu0 0.0
        %705 = vmatpush1.msra.mxu0 0.0
        %706 = vmatprep.subr.mxu0 0.0
        %707 = vmatpush1.msra.mxu0 0.0
        %708 = vmatprep.subr.mxu0 0.0
        %709 = vmatpush1.msra.mxu0 0.0
        %710 = vmatprep.subr.mxu0 0.0
        %711 = vmatpush1.msra.mxu0 0.0
        %712 = vmatprep.subr.mxu0 0.0
        %713 = vmatpush1.msra.mxu0 0.0
        %714 = vmatprep.subr.mxu0 0.0
        %715 = vmatpush1.msra.mxu0 0.0
        %716 = vmatprep.subr.mxu0 0.0
        %717 = vmatpush1.msra.mxu0 0.0
        %718 = vmatprep.subr.mxu0 0.0
        %719 = vmatpush1.msra.mxu0 0.0
        %720 = vmatprep.subr.mxu0 0.0
        %721 = vmatpush1.msra.mxu0 0.0
        %722 = vmatprep.subr.mxu0 0.0
        %723 = vmatpush1.msra.mxu0 0.0
        %724 = vmatprep.subr.mxu0 0.0
        %725 = vmatpush1.msra.mxu0 0.0
        %726 = vmatprep.subr.mxu0 0.0
        %727 = vmatpush1.msra.mxu0 0.0
        %728 = vmatprep.subr.mxu0 0.0
        %729 = vmatpush1.msra.mxu0 0.0
        %730 = vmatprep.subr.mxu0 0.0
        %731 = vmatpush1.msra.mxu0 0.0
        %732 = vmatprep.subr.mxu0 0.0
        %733 = vmatpush1.msra.mxu0 0.0
        %734 = vmatprep.subr.mxu0 0.0
        %735 = vmatpush1.msra.mxu0 0.0
        %736 = vmatprep.mubr.f32.mxu0 0.0
        %737 = vmatmul.mubr.f32.gmra.mrb[0].mxu0 %v600
        %v738 = vpop.f32.mrb[0].mxu0
        %v739 = vadd.f32 %v669, %v738
        %v740 = vpop.f32.mrb[0].mxu0
        %741 = vdwg.mxu0
        %vm742 = vcmask 80896
        %v743 = vsel %vm742, %v739, -inf
        %744 = vmax.xlane.f32.xlu0 %v743
        %v745 = vpop.xlane.xlu0 %744
        %v746 = vsub.f32 %v739, %v745
        %v747 = vmul.f32 %v746, 1.442695
        %v748 = vpow.pop %v747
        %v749 = vsel %vm742, %v748, 0.0
        %750 = vadd.xlane.f32.xlu0 %v749
        %v751 = vpop.xlane.xlu0 %750
        %v752 = vrcp.pop %v751
        %v753 = vmul.f32 %v748, %v752
        %v754 = vld [vmem:[%s5] sm:$0xff]
        %v755 = vld [vmem:[%s5 + $0x8] sm:$0xff]
        %v756 = vld [vmem:[%s5 + $0x10] sm:$0xff]
        %v757 = vld [vmem:[%s5 + $0x18] sm:$0x3]
        %v758 = vld [vmem:[%s5 + $0x20] sm:$0x3]
        %v759 = vld [vmem:[%s5 + $0x28] sm:$0x3]
        %v761 = vsel %vm742, %v753, 0
        %vm763 = vcmask 1041408
        %v765 = vsel %vm763, %v757, 0
        %v768 = vsel %vm763, %v758, 0
        %v771 = vsel %vm763, %v759, 0
        %773 = vmatprep.subr.mxu0 %v755
        %774 = vmatpush1.msra.mxu0 %v754
        %775 = vmatprep.subr.mxu0 %v768
        %776 = vmatpush1.msra.mxu0 %v765
        %777 = vmatprep.subr.mxu0 0.0
        %778 = vmatpush1.msra.mxu0 0.0
        %779 = vmatprep.subr.mxu0 0.0
        %780 = vmatpush1.msra.mxu0 0.0
        %781 = vmatprep.subr.mxu0 0.0
        %782 = vmatpush1.msra.mxu0 0.0
        %783 = vmatprep.subr.mxu0 0.0
        %784 = vmatpush1.msra.mxu0 0.0
        %785 = vmatprep.subr.mxu0 0.0
        %786 = vmatpush1.msra.mxu0 0.0
        %787 = vmatprep.subr.mxu0 0.0
        %788 = vmatpush1.msra.mxu0 0.0
        %789 = vmatprep.subr.mxu0 0.0
        %790 = vmatpush1.msra.mxu0 0.0
        %791 = vmatprep.subr.mxu0 0.0
        %792 = vmatpush1.msra.mxu0 0.0
        %793 = vmatprep.subr.mxu0 0.0
        %794 = vmatpush1.msra.mxu0 0.0
        %795 = vmatprep.subr.mxu0 0.0
        %796 = vmatpush1.msra.mxu0 0.0
        %797 = vmatprep.subr.mxu0 0.0
        %798 = vmatpush1.msra.mxu0 0.0
        %799 = vmatprep.subr.mxu0 0.0
        %800 = vmatpush1.msra.mxu0 0.0
        %801 = vmatprep.subr.mxu0 0.0
        %802 = vmatpush1.msra.mxu0 0.0
        %803 = vmatprep.subr.mxu0 0.0
        %804 = vmatpush1.msra.mxu0 0.0
        %805 = vmatprep.subr.mxu0 0.0
        %806 = vmatpush1.msra.mxu0 0.0
        %807 = vmatprep.subr.mxu0 0.0
        %808 = vmatpush1.msra.mxu0 0.0
        %809 = vmatprep.subr.mxu0 0.0
        %810 = vmatpush1.msra.mxu0 0.0
        %811 = vmatprep.subr.mxu0 0.0
        %812 = vmatpush1.msra.mxu0 0.0
        %813 = vmatprep.subr.mxu0 0.0
        %814 = vmatpush1.msra.mxu0 0.0
        %815 = vmatprep.subr.mxu0 0.0
        %816 = vmatpush1.msra.mxu0 0.0
        %817 = vmatprep.subr.mxu0 0.0
        %818 = vmatpush1.msra.mxu0 0.0
        %819 = vmatprep.subr.mxu0 0.0
        %820 = vmatpush1.msra.mxu0 0.0
        %821 = vmatprep.subr.mxu0 0.0
        %822 = vmatpush1.msra.mxu0 0.0
        %823 = vmatprep.subr.mxu0 0.0
        %824 = vmatpush1.msra.mxu0 0.0
        %825 = vmatprep.subr.mxu0 0.0
        %826 = vmatpush1.msra.mxu0 0.0
        %827 = vmatprep.subr.mxu0 0.0
        %828 = vmatpush1.msra.mxu0 0.0
        %829 = vmatprep.subr.mxu0 0.0
        %830 = vmatpush1.msra.mxu0 0.0
        %831 = vmatprep.subr.mxu0 0.0
        %832 = vmatpush1.msra.mxu0 0.0
        %833 = vmatprep.subr.mxu0 0.0
        %834 = vmatpush1.msra.mxu0 0.0
        %835 = vmatprep.subr.mxu0 0.0
        %836 = vmatpush1.msra.mxu0 0.0
        %837 = vmatprep.mubr.f32.mxu0 0.0
        %838 = vmatmul.mubr.f32.gmra.mrb[0].mxu0 %v761
        %v839 = vpop.f32.mrb[0].mxu0
        %v840 = vadd.f32 0.0, %v839
        %v841 = vpop.f32.mrb[0].mxu0
        %v842 = vadd.f32 0.0, %v841
        %843 = vdwg.mxu0
        %844 = vmatprep.subr.mxu0 0.0
        %845 = vmatpush1.msra.mxu0 %v756
        %846 = vmatprep.subr.mxu0 0.0
        %847 = vmatpush1.msra.mxu0 %v771
        %848 = vmatprep.subr.mxu0 0.0
        %849 = vmatpush1.msra.mxu0 0.0
        %850 = vmatprep.subr.mxu0 0.0
        %851 = vmatpush1.msra.mxu0 0.0
        %852 = vmatprep.subr.mxu0 0.0
        %853 = vmatpush1.msra.mxu0 0.0
        %854 = vmatprep.subr.mxu0 0.0
        %855 = vmatpush1.msra.mxu0 0.0
        %856 = vmatprep.subr.mxu0 0.0
        %857 = vmatpush1.msra.mxu0 0.0
        %858 = vmatprep.subr.mxu0 0.0
        %859 = vmatpush1.msra.mxu0 0.0
        %860 = vmatprep.subr.mxu0 0.0
        %861 = vmatpush1.msra.mxu0 0.0
        %862 = vmatprep.subr.mxu0 0.0
        %863 = vmatpush1.msra.mxu0 0.0
        %864 = vmatprep.subr.mxu0 0.0
        %865 = vmatpush1.msra.mxu0 0.0
        %866 = vmatprep.subr.mxu0 0.0
        %867 = vmatpush1.msra.mxu0 0.0
        %868 = vmatprep.subr.mxu0 0.0
        %869 = vmatpush1.msra.mxu0 0.0
        %870 = vmatprep.subr.mxu0 0.0
        %871 = vmatpush1.msra.mxu0 0.0
        %872 = vmatprep.subr.mxu0 0.0
        %873 = vmatpush1.msra.mxu0 0.0
        %874 = vmatprep.subr.mxu0 0.0
        %875 = vmatpush1.msra.mxu0 0.0
        %876 = vmatprep.subr.mxu0 0.0
        %877 = vmatpush1.msra.mxu0 0.0
        %878 = vmatprep.subr.mxu0 0.0
        %879 = vmatpush1.msra.mxu0 0.0
        %880 = vmatprep.subr.mxu0 0.0
        %881 = vmatpush1.msra.mxu0 0.0
        %882 = vmatprep.subr.mxu0 0.0
        %883 = vmatpush1.msra.mxu0 0.0
        %884 = vmatprep.subr.mxu0 0.0
        %885 = vmatpush1.msra.mxu0 0.0
        %886 = vmatprep.subr.mxu0 0.0
        %887 = vmatpush1.msra.mxu0 0.0
        %888 = vmatprep.subr.mxu0 0.0
        %889 = vmatpush1.msra.mxu0 0.0
        %890 = vmatprep.subr.mxu0 0.0
        %891 = vmatpush1.msra.mxu0 0.0
        %892 = vmatprep.subr.mxu0 0.0
        %893 = vmatpush1.msra.mxu0 0.0
        %894 = vmatprep.subr.mxu0 0.0
        %895 = vmatpush1.msra.mxu0 0.0
        %896 = vmatprep.subr.mxu0 0.0
        %897 = vmatpush1.msra.mxu0 0.0
        %898 = vmatprep.subr.mxu0 0.0
        %899 = vmatpush1.msra.mxu0 0.0
        %900 = vmatprep.subr.mxu0 0.0
        %901 = vmatpush1.msra.mxu0 0.0
        %902 = vmatprep.subr.mxu0 0.0
        %903 = vmatpush1.msra.mxu0 0.0
        %904 = vmatprep.subr.mxu0 0.0
        %905 = vmatpush1.msra.mxu0 0.0
        %906 = vmatprep.subr.mxu0 0.0
        %907 = vmatpush1.msra.mxu0 0.0
        %908 = vmatprep.mubr.f32.mxu0 0.0
        %909 = vmatmul.mubr.f32.gmra.mrb[0].mxu0 %v761
        %v910 = vpop.f32.mrb[0].mxu0
        %v911 = vadd.f32 0.0, %v910
        %v912 = vpop.f32.mrb[0].mxu0
        %913 = vdwg.mxu0
        %v914 = vmul.f32 %v840, %v378
        %v915 = vmul.f32 %v842, %v379
        %v916 = vmul.f32 %v911, %v380
        %v917 = vld [vmem:[%s6] sm:$0xff]
        %v918 = vld [vmem:[%s6 + $0x8] sm:$0xff]
        %v919 = vld [vmem:[%s6 + $0x10] sm:$0xff]
        %v920 = vld [vmem:[%s6 + $0x18] sm:$0xff]
        %v921 = vld [vmem:[%s6 + $0x20] sm:$0xff]
        %v922 = vld [vmem:[%s6 + $0x28] sm:$0xff]
        %v923 = vld [vmem:[%s6 + $0x30] sm:$0xff]
        %v924 = vld [vmem:[%s6 + $0x38] sm:$0xff]
        %v925 = vld [vmem:[%s6 + $0x40] sm:$0xff]
        %v926 = vld [vmem:[%s6 + $0x48] sm:$0xff]
        %v927 = vld [vmem:[%s6 + $0x50] sm:$0xff]
        %v928 = vld [vmem:[%s6 + $0x58] sm:$0xff]
        %v929 = vld [vmem:[%s6 + $0x60] sm:$0xff]
        %v930 = vld [vmem:[%s6 + $0x68] sm:$0xff]
        %v931 = vld [vmem:[%s6 + $0x70] sm:$0xff]
        %v932 = vld [vmem:[%s6 + $0x78] sm:$0xff]
        %v933 = vld [vmem:[%s6 + $0x80] sm:$0xff]
        %v934 = vld [vmem:[%s6 + $0x88] sm:$0xff]
        %v935 = vld [vmem:[%s6 + $0x90] sm:$0xff]
        %v936 = vld [vmem:[%s6 + $0x98] sm:$0xff]
        %v937 = vld [vmem:[%s6 + $0xa0] sm:$0xff]
        %v938 = vld [vmem:[%s6 + $0xa8] sm:$0xff]
        %v939 = vld [vmem:[%s6 + $0xb0] sm:$0xff]
        %v940 = vld [vmem:[%s6 + $0xb8] sm:$0xff]
        %v941 = vld [vmem:[%s6 + $0xc0] sm:$0xff]
        %v942 = vld [vmem:[%s6 + $0xc8] sm:$0xff]
        %v943 = vld [vmem:[%s6 + $0xd0] sm:$0xff]
        %v944 = vld [vmem:[%s6 + $0xd8] sm:$0xff]
        %v945 = vld [vmem:[%s6 + $0xe0] sm:$0xff]
        %v946 = vld [vmem:[%s6 + $0xe8] sm:$0xff]
        %v947 = vld [vmem:[%s6 + $0xf0] sm:$0xff]
        %v948 = vld [vmem:[%s6 + $0xf8] sm:$0xff]
        %v949 = vld [vmem:[%s6 + $0x100] sm:$0xff]
        %v950 = vld [vmem:[%s6 + $0x108] sm:$0xff]
        %v951 = vld [vmem:[%s6 + $0x110] sm:$0xff]
        %v952 = vld [vmem:[%s6 + $0x118] sm:$0xff]
        %v953 = vld [vmem:[%s6 + $0x120] sm:$0xff]
        %v954 = vld [vmem:[%s6 + $0x128] sm:$0xff]
        %v955 = vld [vmem:[%s6 + $0x130] sm:$0xff]
        %v956 = vld [vmem:[%s6 + $0x138] sm:$0xff]
        %v957 = vld [vmem:[%s9] sm:$0x1]
        %v958 = vlaneseq
        %v959 = vshrl.u32 %v958, 7
        %v960 = vsub.s32 0, %v959
        %v961 = vrot.slane %v957, %v960
        %v963 = vsel %vm598, %v916, 0
        %965 = vmatprep.subr.mxu0 0.0
        %966 = vmatpush1.msra.mxu0 %v917
        %967 = vmatprep.subr.mxu0 0.0
        %968 = vmatpush1.msra.mxu0 %v918
        %969 = vmatprep.subr.mxu0 0.0
        %970 = vmatpush1.msra.mxu0 %v919
        %971 = vmatprep.subr.mxu0 0.0
        %972 = vmatpush1.msra.mxu0 %v920
        %973 = vmatprep.subr.mxu0 0.0
        %974 = vmatpush1.msra.mxu0 %v921
        %975 = vmatprep.subr.mxu0 0.0
        %976 = vmatpush1.msra.mxu0 %v922
        %977 = vmatprep.subr.mxu0 0.0
        %978 = vmatpush1.msra.mxu0 %v923
        %979 = vmatprep.subr.mxu0 0.0
        %980 = vmatpush1.msra.mxu0 %v924
        %981 = vmatprep.subr.mxu0 0.0
        %982 = vmatpush1.msra.mxu0 %v925
        %983 = vmatprep.subr.mxu0 0.0
        %984 = vmatpush1.msra.mxu0 %v926
        %985 = vmatprep.subr.mxu0 0.0
        %986 = vmatpush1.msra.mxu0 %v927
        %987 = vmatprep.subr.mxu0 0.0
        %988 = vmatpush1.msra.mxu0 %v928
        %989 = vmatprep.subr.mxu0 0.0
        %990 = vmatpush1.msra.mxu0 %v929
        %991 = vmatprep.subr.mxu0 0.0
        %992 = vmatpush1.msra.mxu0 %v930
        %993 = vmatprep.subr.mxu0 0.0
        %994 = vmatpush1.msra.mxu0 %v931
        %995 = vmatprep.subr.mxu0 0.0
        %996 = vmatpush1.msra.mxu0 %v932
        %997 = vmatprep.subr.mxu0 0.0
        %998 = vmatpush1.msra.mxu0 %v933
        %999 = vmatprep.subr.mxu0 0.0
        %1000 = vmatpush1.msra.mxu0 %v934
        %1001 = vmatprep.subr.mxu0 0.0
        %1002 = vmatpush1.msra.mxu0 %v935
        %1003 = vmatprep.subr.mxu0 0.0
        %1004 = vmatpush1.msra.mxu0 %v936
        %1005 = vmatprep.subr.mxu0 0.0
        %1006 = vmatpush1.msra.mxu0 %v937
        %1007 = vmatprep.subr.mxu0 0.0
        %1008 = vmatpush1.msra.mxu0 %v938
        %1009 = vmatprep.subr.mxu0 0.0
        %1010 = vmatpush1.msra.mxu0 %v939
        %1011 = vmatprep.subr.mxu0 0.0
        %1012 = vmatpush1.msra.mxu0 %v940
        %1013 = vmatprep.subr.mxu0 0.0
        %1014 = vmatpush1.msra.mxu0 %v941
        %1015 = vmatprep.subr.mxu0 0.0
        %1016 = vmatpush1.msra.mxu0 %v942
        %1017 = vmatprep.subr.mxu0 0.0
        %1018 = vmatpush1.msra.mxu0 %v943
        %1019 = vmatprep.subr.mxu0 0.0
        %1020 = vmatpush1.msra.mxu0 %v944
        %1021 = vmatprep.subr.mxu0 0.0
        %1022 = vmatpush1.msra.mxu0 %v945
        %1023 = vmatprep.subr.mxu0 0.0
        %1024 = vmatpush1.msra.mxu0 %v946
        %1025 = vmatprep.subr.mxu0 0.0
        %1026 = vmatpush1.msra.mxu0 %v947
        %1027 = vmatprep.subr.mxu0 0.0
        %1028 = vmatpush1.msra.mxu0 %v948
        %1029 = vmatprep.mubr.f32.mxu0 %v915
        %1030 = vmatmul.mubr.f32.gmra.mrb[0].mxu0 %v914
        %v1031 = vpop.f32.mrb[0].mxu0
        %v1032 = vadd.f32 %v961, %v1031
        %v1033 = vpop.f32.mrb[0].mxu0
        %1034 = vdwg.mxu0
        %1035 = vmatprep.subr.mxu0 0.0
        %1036 = vmatpush1.msra.mxu0 %v949
        %1037 = vmatprep.subr.mxu0 0.0
        %1038 = vmatpush1.msra.mxu0 %v950
        %1039 = vmatprep.subr.mxu0 0.0
        %1040 = vmatpush1.msra.mxu0 %v951
        %1041 = vmatprep.subr.mxu0 0.0
        %1042 = vmatpush1.msra.mxu0 %v952
        %1043 = vmatprep.subr.mxu0 0.0
        %1044 = vmatpush1.msra.mxu0 %v953
        %1045 = vmatprep.subr.mxu0 0.0
        %1046 = vmatpush1.msra.mxu0 %v954
        %1047 = vmatprep.subr.mxu0 0.0
        %1048 = vmatpush1.msra.mxu0 %v955
        %1049 = vmatprep.subr.mxu0 0.0
        %1050 = vmatpush1.msra.mxu0 %v956
        %1051 = vmatprep.subr.mxu0 0.0
        %1052 = vmatpush1.msra.mxu0 0.0
        %1053 = vmatprep.subr.mxu0 0.0
        %1054 = vmatpush1.msra.mxu0 0.0
        %1055 = vmatprep.subr.mxu0 0.0
        %1056 = vmatpush1.msra.mxu0 0.0
        %1057 = vmatprep.subr.mxu0 0.0
        %1058 = vmatpush1.msra.mxu0 0.0
        %1059 = vmatprep.subr.mxu0 0.0
        %1060 = vmatpush1.msra.mxu0 0.0
        %1061 = vmatprep.subr.mxu0 0.0
        %1062 = vmatpush1.msra.mxu0 0.0
        %1063 = vmatprep.subr.mxu0 0.0
        %1064 = vmatpush1.msra.mxu0 0.0
        %1065 = vmatprep.subr.mxu0 0.0
        %1066 = vmatpush1.msra.mxu0 0.0
        %1067 = vmatprep.subr.mxu0 0.0
        %1068 = vmatpush1.msra.mxu0 0.0
        %1069 = vmatprep.subr.mxu0 0.0
        %1070 = vmatpush1.msra.mxu0 0.0
        %1071 = vmatprep.subr.mxu0 0.0
        %1072 = vmatpush1.msra.mxu0 0.0
        %1073 = vmatprep.subr.mxu0 0.0
        %1074 = vmatpush1.msra.mxu0 0.0
        %1075 = vmatprep.subr.mxu0 0.0
        %1076 = vmatpush1.msra.mxu0 0.0
        %1077 = vmatprep.subr.mxu0 0.0
        %1078 = vmatpush1.msra.mxu0 0.0
        %1079 = vmatprep.subr.mxu0 0.0
        %1080 = vmatpush1.msra.mxu0 0.0
        %1081 = vmatprep.subr.mxu0 0.0
        %1082 = vmatpush1.msra.mxu0 0.0
        %1083 = vmatprep.subr.mxu0 0.0
        %1084 = vmatpush1.msra.mxu0 0.0
        %1085 = vmatprep.subr.mxu0 0.0
        %1086 = vmatpush1.msra.mxu0 0.0
        %1087 = vmatprep.subr.mxu0 0.0
        %1088 = vmatpush1.msra.mxu0 0.0
        %1089 = vmatprep.subr.mxu0 0.0
        %1090 = vmatpush1.msra.mxu0 0.0
        %1091 = vmatprep.subr.mxu0 0.0
        %1092 = vmatpush1.msra.mxu0 0.0
        %1093 = vmatprep.subr.mxu0 0.0
        %1094 = vmatpush1.msra.mxu0 0.0
        %1095 = vmatprep.subr.mxu0 0.0
        %1096 = vmatpush1.msra.mxu0 0.0
        %1097 = vmatprep.subr.mxu0 0.0
        %1098 = vmatpush1.msra.mxu0 0.0
        %1099 = vmatprep.mubr.f32.mxu0 0.0
        %1100 = vmatmul.mubr.f32.gmra.mrb[0].mxu0 %v963
        %v1101 = vpop.f32.mrb[0].mxu0
        %v1102 = vadd.f32 %v1032, %v1101
        %v1103 = vpop.f32.mrb[0].mxu0
        %1104 = vdwg.mxu0
        %v1105 = vld [vmem:[%s7] sm:$0xff]
        %v1106 = vld [vmem:[%s7 + $0x8] sm:$0xff]
        %v1107 = vld [vmem:[%s7 + $0x10] sm:$0xff]
        %v1108 = vld [vmem:[%s7 + $0x18] sm:$0xff]
        %v1110 = vsel %vm410, %v1102, 0
        %1112 = vmatprep.subr.mxu0 0.0
        %1113 = vmatpush1.msra.mxu0 %v1105
        %1114 = vmatprep.subr.mxu0 0.0
        %1115 = vmatpush1.msra.mxu0 %v1106
        %1116 = vmatprep.subr.mxu0 0.0
        %1117 = vmatpush1.msra.mxu0 %v1107
        %1118 = vmatprep.subr.mxu0 0.0
        %1119 = vmatpush1.msra.mxu0 %v1108
        %1120 = vmatprep.subr.mxu0 0.0
        %1121 = vmatpush1.msra.mxu0 0.0
        %1122 = vmatprep.subr.mxu0 0.0
        %1123 = vmatpush1.msra.mxu0 0.0
        %1124 = vmatprep.subr.mxu0 0.0
        %1125 = vmatpush1.msra.mxu0 0.0
        %1126 = vmatprep.subr.mxu0 0.0
        %1127 = vmatpush1.msra.mxu0 0.0
        %1128 = vmatprep.subr.mxu0 0.0
        %1129 = vmatpush1.msra.mxu0 0.0
        %1130 = vmatprep.subr.mxu0 0.0
        %1131 = vmatpush1.msra.mxu0 0.0
        %1132 = vmatprep.subr.mxu0 0.0
        %1133 = vmatpush1.msra.mxu0 0.0
        %1134 = vmatprep.subr.mxu0 0.0
        %1135 = vmatpush1.msra.mxu0 0.0
        %1136 = vmatprep.subr.mxu0 0.0
        %1137 = vmatpush1.msra.mxu0 0.0
        %1138 = vmatprep.subr.mxu0 0.0
        %1139 = vmatpush1.msra.mxu0 0.0
        %1140 = vmatprep.subr.mxu0 0.0
        %1141 = vmatpush1.msra.mxu0 0.0
        %1142 = vmatprep.subr.mxu0 0.0
        %1143 = vmatpush1.msra.mxu0 0.0
        %1144 = vmatprep.subr.mxu0 0.0
        %1145 = vmatpush1.msra.mxu0 0.0
        %1146 = vmatprep.subr.mxu0 0.0
        %1147 = vmatpush1.msra.mxu0 0.0
        %1148 = vmatprep.subr.mxu0 0.0
        %1149 = vmatpush1.msra.mxu0 0.0
        %1150 = vmatprep.subr.mxu0 0.0
        %1151 = vmatpush1.msra.mxu0 0.0
        %1152 = vmatprep.subr.mxu0 0.0
        %1153 = vmatpush1.msra.mxu0 0.0
        %1154 = vmatprep.subr.mxu0 0.0
        %1155 = vmatpush1.msra.mxu0 0.0
        %1156 = vmatprep.subr.mxu0 0.0
        %1157 = vmatpush1.msra.mxu0 0.0
        %1158 = vmatprep.subr.mxu0 0.0
        %1159 = vmatpush1.msra.mxu0 0.0
        %1160 = vmatprep.subr.mxu0 0.0
        %1161 = vmatpush1.msra.mxu0 0.0
        %1162 = vmatprep.subr.mxu0 0.0
        %1163 = vmatpush1.msra.mxu0 0.0
        %1164 = vmatprep.subr.mxu0 0.0
        %1165 = vmatpush1.msra.mxu0 0.0
        %1166 = vmatprep.subr.mxu0 0.0
        %1167 = vmatpush1.msra.mxu0 0.0
        %1168 = vmatprep.subr.mxu0 0.0
        %1169 = vmatpush1.msra.mxu0 0.0
        %1170 = vmatprep.subr.mxu0 0.0
        %1171 = vmatpush1.msra.mxu0 0.0
        %1172 = vmatprep.subr.mxu0 0.0
        %1173 = vmatpush1.msra.mxu0 0.0
        %1174 = vmatprep.subr.mxu0 0.0
        %1175 = vmatpush1.msra.mxu0 0.0
        %1176 = vmatprep.mubr.f32.mxu0 0.0
        %1177 = vmatmul.mubr.f32.gmra.mrb[0].mxu0 %v1110
        %v1178 = vpop.f32.mrb[0].mxu0
        %v1179 = vadd.f32 0.0, %v1178
        %v1180 = vpop.f32.mrb[0].mxu0
        %1181 = vdwg.mxu0
        %v1182 = vmax.f32 %v1179, 0.0
        %v1183 = vld [vmem:[%s8] sm:$0xff]
        %vm1184 = vcmask 64512
        %v1186 = vsel %vm1184, %v1182, 0
        %1188 = vmatprep.subr.mxu0 0.0
        %1189 = vmatpush1.msra.mxu0 %v1183
        %1190 = vmatprep.subr.mxu0 0.0
        %1191 = vmatpush1.msra.mxu0 0.0
        %1192 = vmatprep.subr.mxu0 0.0
        %1193 = vmatpush1.msra.mxu0 0.0
        %1194 = vmatprep.subr.mxu0 0.0
        %1195 = vmatpush1.msra.mxu0 0.0
        %1196 = vmatprep.subr.mxu0 0.0
        %1197 = vmatpush1.msra.mxu0 0.0
        %1198 = vmatprep.subr.mxu0 0.0
        %1199 = vmatpush1.msra.mxu0 0.0
        %1200 = vmatprep.subr.mxu0 0.0
        %1201 = vmatpush1.msra.mxu0 0.0
        %1202 = vmatprep.subr.mxu0 0.0
        %1203 = vmatpush1.msra.mxu0 0.0
        %1204 = vmatprep.subr.mxu0 0.0
        %1205 = vmatpush1.msra.mxu0 0.0
        %1206 = vmatprep.subr.mxu0 0.0
        %1207 = vmatpush1.msra.mxu0 0.0
        %1208 = vmatprep.subr.mxu0 0.0
        %1209 = vmatpush1.msra.mxu0 0.0
        %1210 = vmatprep.subr.mxu0 0.0
        %1211 = vmatpush1.msra.mxu0 0.0
        %1212 = vmatprep.subr.mxu0 0.0
        %1213 = vmatpush1.msra.mxu0 0.0
        %1214 = vmatprep.subr.mxu0 0.0
        %1215 = vmatpush1.msra.mxu0 0.0
        %1216 = vmatprep.subr.mxu0 0.0
        %1217 = vmatpush1.msra.mxu0 0.0
        %1218 = vmatprep.subr.mxu0 0.0
        %1219 = vmatpush1.msra.mxu0 0.0
        %1220 = vmatprep.subr.mxu0 0.0
        %1221 = vmatpush1.msra.mxu0 0.0
        %1222 = vmatprep.subr.mxu0 0.0
        %1223 = vmatpush1.msra.mxu0 0.0
        %1224 = vmatprep.subr.mxu0 0.0
        %1225 = vmatpush1.msra.mxu0 0.0
        %1226 = vmatprep.subr.mxu0 0.0
        %1227 = vmatpush1.msra.mxu0 0.0
        %1228 = vmatprep.subr.mxu0 0.0
        %1229 = vmatpush1.msra.mxu0 0.0
        %1230 = vmatprep.subr.mxu0 0.0
        %1231 = vmatpush1.msra.mxu0 0.0
        %1232 = vmatprep.subr.mxu0 0.0
        %1233 = vmatpush1.msra.mxu0 0.0
        %1234 = vmatprep.subr.mxu0 0.0
        %1235 = vmatpush1.msra.mxu0 0.0
        %1236 = vmatprep.subr.mxu0 0.0
        %1237 = vmatpush1.msra.mxu0 0.0
        %1238 = vmatprep.subr.mxu0 0.0
        %1239 = vmatpush1.msra.mxu0 0.0
        %1240 = vmatprep.subr.mxu0 0.0
        %1241 = vmatpush1.msra.mxu0 0.0
        %1242 = vmatprep.subr.mxu0 0.0
        %1243 = vmatpush1.msra.mxu0 0.0
        %1244 = vmatprep.subr.mxu0 0.0
        %1245 = vmatpush1.msra.mxu0 0.0
        %1246 = vmatprep.subr.mxu0 0.0
        %1247 = vmatpush1.msra.mxu0 0.0
        %1248 = vmatprep.subr.mxu0 0.0
        %1249 = vmatpush1.msra.mxu0 0.0
        %1250 = vmatprep.subr.mxu0 0.0
        %1251 = vmatpush1.msra.mxu0 0.0
        %1252 = vmatprep.mubr.f32.mxu0 0.0
        %1253 = vmatmul.mubr.f32.gmra.mrb[0].mxu0 %v1186
        %v1254 = vpop.f32.mrb[0].mxu0
        %v1255 = vadd.f32 0.0, %v1254
        %v1256 = vpop.f32.mrb[0].mxu0
        %1257 = vdwg.mxu0
        %v1258 = vxor.u32 %v1255, 2147483648
        %v1259 = vmul.f32 %v1258, 1.442695
        %v1260 = vpow.pop %v1259
        %v1261 = vadd.f32 %v1260, 1.0
        %v1262 = vrcp.pop %v1261
        %v1263 = vmul.f32 1.0, %v1262
        %v1264 = vmul.f32 %v1102, %v1263
        %v1265 = vld [vmem:[%s9 + $0x1] sm:$0x1]
        %v1266 = vlaneseq
        %v1267 = vshrl.u32 %v1266, 7
        %v1268 = vsub.s32 0, %v1267
        %v1269 = vrot.slane %v1265, %v1268
        %v1270 = vmul.f32 %v1264, %v1269
        %v1271 = vsel %vm410, %v1270, 0.0
        %1272 = vadd.xlane.f32.xlu0 %v1271
        %v1273 = vpop.xlane.xlu0 %1272
        %v1274 = vadd.f32 %v552, %v1273
        %v1275 = vxor.u32 %v1274, 2147483648
        %v1276 = vmul.f32 %v1275, 1.442695
        %v1277 = vpow.pop %v1276
        %v1278 = vadd.f32 %v1277, 1.0
        %v1279 = vrcp.pop %v1278
        %v1280 = vmul.f32 1.0, %v1279
        %1282 = vset.pattern.permute.xlu0 64
        %1283 = vperm.xlu0 %1282, %v1280
        %v1284 = vpop.permute.xlu0 %1283
        %v1286 = vmul.f32 %v1284, %v1264
        %v1287 = vsub.f32 1.0, %v1280
        %1289 = vset.pattern.permute.xlu0 64
        %1290 = vperm.xlu0 %1289, %v1287
        %v1291 = vpop.permute.xlu0 %1290
        %v1293 = vmul.f32 %v1291, %v375
        %v1294 = vadd.f32 %v1286, %v1293
        %1295 = vst.msk [vmem:[%s365] sm:$0xff] %vm410, %v1294
        %s1296 = sand.u32 %s252, 1
        %s1297 = scalar_lea.sflag [#allocation3], %s1296
        %s1298 = sand.u32 %s252, 1
        %s1299 = smul.addr %s1298, 8
        %s1300 = scalar_lea.vmem [#allocation2], %s1299
        // Predicated region
        $region61: #{tpu_custom_call.1} parent=59 // pred_check
          %p1301 = pneg %p262
        $region62: #{tpu_custom_call.1} parent=59 // pred_check_branch
          %1303 = sbr.rel (%p1301) target = $region64
        $region63: #{tpu_custom_call.1} parent=59 // pred_region
          %s1305 = ssub.s32 128, 128
          %1306 = vsyncadd %s1297, %s1305
          %s1307 = smul.addr %s24, 128
          %s1308 = scalar_lea.hbm %s10, %s1307
          %s1310 = sshll.u32 %s1300, 4
          %s1311 = int_to_ptr.vmem [resolvable:$true] %s1310
          %1313 = dma.vmem_to_hbm [thread:$0]  %s1311, 128, %s1308, %s1297
        $region64: #{tpu_custom_call.1} parent=59 // pred_fallthru
          _
      $region60: #{tpu_custom_call.1} parent=5 // pred_fallthru
        _
      %p1314 = scmp.le.s32.totalorder 2, %s19
      // Predicated region
      $region65: #{tpu_custom_call.1} parent=5 // pred_check
        %p1315 = pneg %p1314
      $region66: #{tpu_custom_call.1} parent=5 // pred_check_branch
        %1317 = sbr.rel (%p1315) target = $region68
      $region67: #{tpu_custom_call.1} parent=5 // pred_region
        %s1318 = ssub.s32 %s19, 2
        // Predicated region
        $region69: #{tpu_custom_call.1} parent=67 // pred_check
          %p1319 = pneg %p268
        $region70: #{tpu_custom_call.1} parent=67 // pred_check_branch
          %1321 = sbr.rel (%p1319) target = $region72
        $region71: #{tpu_custom_call.1} parent=67 // pred_region
          %s1322 = sand.u32 %s253, 1
          %s1323 = scalar_lea.sflag [#allocation3], %s1322
          %s1324 = sand.u32 %s253, 1
          %s1325 = smul.addr %s1324, 8
          %s1326 = scalar_lea.vmem [#allocation2], %s1325
          %1327 = dma.done %s1323, 128
        $region72: #{tpu_custom_call.1} parent=67 // pred_fallthru
          _
      $region68: #{tpu_custom_call.1} parent=5 // pred_fallthru
        _
    $region6: #{tpu_custom_call.1} parent=1 // loop_footer
      %s23 = sadd.s32 1, %s19
    $region7: #{tpu_custom_call.1} parent=1 // loop_footer_branch
      %18 = sbr.rel target = $region3
    $region8: #{tpu_custom_call.1} parent=1 // loop_exit
      _
    %1328 = vsyncpa [#allocation3], 1
    %s1329 = scalar_lea.sflag [#allocation3], 1
    %1330 = vsyncpa %s1329, 1

</llo_original>
